<compile_context>
chip_gen: v7x
topology: tpu7x:2x2x1
jax: 0.10.0
libtpu: 0.0.40
codegen_flags: <defaults>
</compile_context>

<pallas_src>
import functools
import math

import jax
import jax.numpy as jnp
from jax.experimental import pallas as pl
from jax.experimental.pallas import tpu as pltpu


def _round_up(x, n):
    return (x + n - 1) // n * n


def _wavg_kernel(x_ref, w_ref, o_ref, *, precision):
    # x_ref: (TM, FP) packed-row tile, input's native dtype (no upcast).
    # w_ref: (FP, K) block-diagonal weights, same dtype as x.
    # o_ref: (TM, K) per-(packed-row, slot) weighted sums, x.dtype.
    #
    # MXU contraction over FP with f32 accumulation.  The result layout
    # (rows on sublanes, K slots on lanes) matches the output block layout
    # directly -> no XLU cross-lane reduce, no column->lane relayout.
    o_ref[...] = jax.lax.dot_general(
        x_ref[...], w_ref[...],
        dimension_numbers=(((1,), (0,)), ((), ())),
        precision=precision,
        preferred_element_type=jnp.float32,
    ).astype(o_ref.dtype)


def _choose_packing(m, in_features):
    """Rows packed per VMEM row so that k*F fills whole 128-lane groups."""
    if in_features >= 128:
        return 1
    k0 = 128 // math.gcd(in_features, 128)  # smallest k with (k*F) % 128 == 0
    best = 1
    k = k0
    # Prefer the largest feasible k (denser output stores), keep the packed
    # row / block-diagonal weight matrix a sane size.
    while k <= 128 and k * in_features <= 4096:
        if m % k == 0:
            best = k
        k += k0
    return best


def _choose_rows(mp, fp, k, x_itemsize, out_itemsize):
    """Row-tile size: byte-budgeted against the lane-padded VMEM tiles."""
    x_row = _round_up(fp, 128) * x_itemsize     # lane-padded input row bytes
    o_row = _round_up(k, 128) * out_itemsize    # lane-padded output row bytes
    per_row = 2 * (x_row + o_row)               # double-buffered in/out windows
    budget = 24 * 1024 * 1024                   # multi-MiB steps; v5e..v7x safe
    tm = budget // per_row
    if tm >= mp:
        return mp                               # single block == full array
    return max(8, (tm // 8) * 8)                # sublane-aligned tile


def weighted_average(x, weights, *, learnable=False):
    """Pallas-backed equivalent of WeightedAverage.forward."""
    in_features = weights.shape[0]
    assert x.shape[-1] == in_features, (
        f"Input of shape {x.shape} does not have last dimension matching "
        f"in_features {in_features}")

    # Parameter glue (tiny, plain JAX): softmax only if learnable.
    w = jax.nn.softmax(weights.astype(jnp.float32)) if learnable \
        else weights.astype(jnp.float32)

    lead = x.shape[:-1]
    m = math.prod(lead) if lead else 1

    x_dtype = x.dtype
    out_dtype = x_dtype
    if x_dtype == jnp.float32:
        w_dtype = jnp.float32
        # Keep f32 parity with the PyTorch reference (avoid bf16-pass drift).
        precision = jax.lax.Precision.HIGHEST
    else:
        w_dtype = x_dtype                       # bf16 fed natively to the MXU
        precision = None

    # Row packing: k logical rows per VMEM row, block-diagonal weights.
    k = _choose_packing(m, in_features)
    fp = k * in_features
    mp = m // k
    x2 = x.reshape(mp, fp)                      # metadata-only reshape

    # (FP, K) block diagonal: column j applies w to packed slot j.
    w_mat = jnp.kron(jnp.eye(k, dtype=jnp.float32),
                     w.reshape(in_features, 1)).astype(w_dtype)

    x_itemsize = jnp.dtype(x_dtype).itemsize
    out_itemsize = jnp.dtype(out_dtype).itemsize
    tm = _choose_rows(mp, fp, k, x_itemsize, out_itemsize)

    grid = pl.cdiv(mp, tm)                      # ragged last block is masked

    # Explicit scoped-VMEM limit sized to the real (lane-padded) working set:
    # double-buffered x and out windows + weight block, plus headroom.
    x_win = 2 * tm * _round_up(fp, 128) * x_itemsize
    o_win = 2 * tm * _round_up(k, 128) * out_itemsize
    w_win = 2 * _round_up(fp, 8) * _round_up(k, 128) * jnp.dtype(w_dtype).itemsize
    vmem_limit = int((x_win + o_win + w_win) * 1.25) + (2 << 20)
    vmem_limit = min(max(vmem_limit, 16 << 20), 50 << 20)  # < v7x 64 MiB phys

    out = pl.pallas_call(
        functools.partial(_wavg_kernel, precision=precision),
        out_shape=jax.ShapeDtypeStruct((mp, k), out_dtype),
        grid_spec=pltpu.PrefetchScalarGridSpec(
            num_scalar_prefetch=0,
            grid=(grid,),
            in_specs=[
                pl.BlockSpec((tm, fp), lambda i: (i, 0)),
                pl.BlockSpec((fp, k), lambda i: (0, 0)),
            ],
            out_specs=pl.BlockSpec((tm, k), lambda i: (i, 0)),
        ),
        compiler_params=pltpu.CompilerParams(
            dimension_semantics=("parallel",),
            vmem_limit_bytes=vmem_limit),
        cost_estimate=pl.CostEstimate(
            flops=2 * m * in_features,
            transcendentals=0,
            bytes_accessed=(m * in_features * x_itemsize
                            + m * out_itemsize
                            + fp * k * jnp.dtype(w_dtype).itemsize)),
    )(x2, w_mat)

    return out.reshape(lead)


def make_weights(in_features, learnable, key):
    """Deterministic parameter init mirroring WeightedAverage.__init__."""
    if learnable:
        return jax.random.normal(key, (in_features,), dtype=jnp.float32)
    if in_features == 1:
        # Guard the 0.5/(F-1) division-by-zero present in the PyTorch init.
        return jnp.array([0.5], dtype=jnp.float32)
    return jnp.array(
        [0.5] + [0.5 / (in_features - 1)] * (in_features - 1),
        dtype=jnp.float32)


if __name__ == "__main__":
    key = jax.random.PRNGKey(0)
    kx, kw, kx2 = jax.random.split(key, 3)

    batch, seq, in_features = 2, 8, 32
    x = jax.random.normal(kx, (batch, seq, in_features), dtype=jnp.float32)

    # --- non-learnable path (default weights), f32 input (packed, k=16) ---
    w_fixed = make_weights(in_features, learnable=False, key=kw)
    y_fixed = jax.block_until_ready(
        weighted_average(x, w_fixed, learnable=False))
    ref_fixed = jnp.sum(x * w_fixed, axis=-1)

    # --- learnable path (softmax of randn weights), f32 input ---
    w_learn = make_weights(in_features, learnable=True, key=kw)
    y_learn = jax.block_until_ready(
        weighted_average(x, w_learn, learnable=True))
    ref_learn = jnp.sum(x * jax.nn.softmax(w_learn), axis=-1)

    # --- bf16 input, row count not a power of two (packed, k=52) ---
    xb = jax.random.normal(kx2, (3, 52, in_features), dtype=jnp.bfloat16)
    y_bf16 = jax.block_until_ready(
        weighted_average(xb, w_fixed, learnable=False))
    ref_bf16 = jnp.sum(xb.astype(jnp.float32) * w_fixed, axis=-1)

    assert y_fixed.shape == (batch, seq) and y_fixed.dtype == jnp.float32
    assert y_learn.shape == (batch, seq) and y_learn.dtype == jnp.float32
    assert y_bf16.shape == (3, 52) and y_bf16.dtype == jnp.bfloat16
    assert jnp.allclose(y_fixed, ref_fixed, atol=1e-5, rtol=1e-5)
    assert jnp.allclose(y_learn, ref_learn, atol=1e-5, rtol=1e-5)
    assert jnp.allclose(y_bf16.astype(jnp.float32), ref_bf16,
                        atol=2e-2, rtol=2e-2)

    print("KERNEL_OK")
</pallas_src>

<mosaic_0001>
module attributes {stable_mosaic.version = 11 : i64} {
  func.func @_wavg_kernel(%arg0: i32, %arg1: memref<1x512xf32, #tpu.memory_space<vmem>>, %arg2: memref<512x16xf32, #tpu.memory_space<vmem>>, %arg3: memref<1x16xf32, #tpu.memory_space<vmem>>) attributes {dimension_semantics = [#tpu.dimension_semantics<parallel>], iteration_bounds = array<i64: 1>, scalar_prefetch = 0 : i64, scratch_operands = 0 : i64, tpu.core_type = #tpu.core_type<tc>, window_params = [{transform_indices = @transform_0, window_bounds = array<i64: 1, 512>}, {pipeline_mode = #tpu.pipeline_mode<synchronous>, transform_indices = @transform_1, window_bounds = array<i64: 512, 16>}, {transform_indices = @transform_2, window_bounds = array<i64: 1, 16>}]} {
    %c0 = arith.constant 0 : index
    %c0_0 = arith.constant 0 : index
    %0 = vector.load %arg1[%c0, %c0_0] : memref<1x512xf32, #tpu.memory_space<vmem>>, vector<1x512xf32>
    %c0_1 = arith.constant 0 : index
    %c0_2 = arith.constant 0 : index
    %1 = vector.load %arg2[%c0_1, %c0_2] : memref<512x16xf32, #tpu.memory_space<vmem>>, vector<512x16xf32>
    %cst = arith.constant dense<0.000000e+00> : vector<1x16xf32>
    %2 = tpu.matmul %0, %1, %cst {dimension_numbers = #tpu.dot_dimension_numbers<[1], [0], [0], [1], [0, 0, 1, 1], [], []>, precision = #tpu.contract_precision<fp32>} : vector<1x512xf32>, vector<512x16xf32>, vector<1x16xf32> -> vector<1x16xf32>
    %c0_3 = arith.constant 0 : index
    %c0_4 = arith.constant 0 : index
    %3 = vector.load %arg3[%c0_3, %c0_4] : memref<1x16xf32, #tpu.memory_space<vmem>>, vector<1x16xf32>
    tpu.vector_store %arg3[%c0_3, %c0_4], %2 {strides = array<i32>} : memref<1x16xf32, #tpu.memory_space<vmem>>, vector<1x16xf32>,
    return
  }
  func.func @transform_0(%arg0: i32) -> (i32, i32) {
    %c0_i32 = arith.constant 0 : i32
    %c0_i32_0 = arith.constant 0 : i32
    return %arg0, %c0_i32 : i32, i32
  }
  func.func @transform_1(%arg0: i32) -> (i32, i32) {
    %c0_i32 = arith.constant 0 : i32
    %c0_i32_0 = arith.constant 0 : i32
    %c0_i32_1 = arith.constant 0 : i32
    return %c0_i32, %c0_i32_0 : i32, i32
  }
  func.func @transform_2(%arg0: i32) -> (i32, i32) {
    %c0_i32 = arith.constant 0 : i32
    %c0_i32_0 = arith.constant 0 : i32
    return %arg0, %c0_i32 : i32, i32
  }
}

</mosaic_0001>

<llo_original>
// kernel: tpu_custom_call.1
$region0: #{tpu_custom_call.1}
  #allocation0 [shape = 'u32[]', space=smem, size = 0x4, offset = 0x4, fixed_abs, tag = 'smem constant byte address 0x4 - core index']
  #allocation1 [shape = 'u32[144,128]{1,0:T(1,128)}', space=vmem, size = 0x12000, scoped, tag = 'internal scratch']
  %s0 = inlined_call_operand.vmem [shape: f32[1,512], index: 0, kind: input, shape index: {}]
  %s1 = inlined_call_operand.vmem [shape: f32[512,16], index: 1, kind: input, shape index: {}]
  %s2 = inlined_call_operand.hbm [shape: f32[1,16], index: 2, kind: output, shape index: {}]
  %s3 = sld [smem:[#allocation0]]
  $region18: #{tpu_custom_call.1} parent=0
    _
  %s5 = ssub.s32 1, %s3
  %s6 = scalar_select 0, %s5, %s3
  $region1: #{tpu_custom_call.1} parent=0
    #allocation2 [shape = 'u8[512]{0}', space=vmem, size = 0x400, scoped, tag = 'output window, operand 0, single buffered']
    #allocation3 [shape = 's32[1]{0}', space=sflag, size = 0x4, scoped, tag = 'scoped memory for tpu_custom_call.1']
    %7 = vsyncpa [#allocation3], 0
    // Predicated region
    $region2: #{tpu_custom_call.1} parent=1 // pred_check
      _
    $region3: #{tpu_custom_call.1} parent=1 // pred_check_branch
      %9 = sbr.rel (0) target = $region5
    $region4: #{tpu_custom_call.1} parent=1 // pred_region
      _
    $region5: #{tpu_custom_call.1} parent=1 // pred_fallthru
      _
    // Predicated region
    $region6: #{tpu_custom_call.1} parent=1 // pred_check
      _
    $region7: #{tpu_custom_call.1} parent=1 // pred_check_branch
      %11 = sbr.rel (0) target = $region9
    $region8: #{tpu_custom_call.1} parent=1 // pred_region
      _
    $region9: #{tpu_custom_call.1} parent=1 // pred_fallthru
      _
    %v12 = vld [vmem:[%s0] sm:$0xf]
    %v13 = vld [vmem:[%s1] sm:$0xff]
    %v14 = vld [vmem:[%s1 + $0x8] sm:$0xff]
    %v15 = vld [vmem:[%s1 + $0x10] sm:$0xff]
    %v16 = vld [vmem:[%s1 + $0x18] sm:$0xff]
    %v17 = vld [vmem:[%s1 + $0x20] sm:$0xff]
    %v18 = vld [vmem:[%s1 + $0x28] sm:$0xff]
    %v19 = vld [vmem:[%s1 + $0x30] sm:$0xff]
    %v20 = vld [vmem:[%s1 + $0x38] sm:$0xff]
    %v21 = vld [vmem:[%s1 + $0x40] sm:$0xff]
    %v22 = vld [vmem:[%s1 + $0x48] sm:$0xff]
    %v23 = vld [vmem:[%s1 + $0x50] sm:$0xff]
    %v24 = vld [vmem:[%s1 + $0x58] sm:$0xff]
    %v25 = vld [vmem:[%s1 + $0x60] sm:$0xff]
    %v26 = vld [vmem:[%s1 + $0x68] sm:$0xff]
    %v27 = vld [vmem:[%s1 + $0x70] sm:$0xff]
    %v28 = vld [vmem:[%s1 + $0x78] sm:$0xff]
    %v29 = vld [vmem:[%s1 + $0x80] sm:$0xff]
    %v30 = vld [vmem:[%s1 + $0x88] sm:$0xff]
    %v31 = vld [vmem:[%s1 + $0x90] sm:$0xff]
    %v32 = vld [vmem:[%s1 + $0x98] sm:$0xff]
    %v33 = vld [vmem:[%s1 + $0xa0] sm:$0xff]
    %v34 = vld [vmem:[%s1 + $0xa8] sm:$0xff]
    %v35 = vld [vmem:[%s1 + $0xb0] sm:$0xff]
    %v36 = vld [vmem:[%s1 + $0xb8] sm:$0xff]
    %v37 = vld [vmem:[%s1 + $0xc0] sm:$0xff]
    %v38 = vld [vmem:[%s1 + $0xc8] sm:$0xff]
    %v39 = vld [vmem:[%s1 + $0xd0] sm:$0xff]
    %v40 = vld [vmem:[%s1 + $0xd8] sm:$0xff]
    %v41 = vld [vmem:[%s1 + $0xe0] sm:$0xff]
    %v42 = vld [vmem:[%s1 + $0xe8] sm:$0xff]
    %v43 = vld [vmem:[%s1 + $0xf0] sm:$0xff]
    %v44 = vld [vmem:[%s1 + $0xf8] sm:$0xff]
    %v45 = vld [vmem:[%s1 + $0x100] sm:$0xff]
    %v46 = vld [vmem:[%s1 + $0x108] sm:$0xff]
    %v47 = vld [vmem:[%s1 + $0x110] sm:$0xff]
    %v48 = vld [vmem:[%s1 + $0x118] sm:$0xff]
    %v49 = vld [vmem:[%s1 + $0x120] sm:$0xff]
    %v50 = vld [vmem:[%s1 + $0x128] sm:$0xff]
    %v51 = vld [vmem:[%s1 + $0x130] sm:$0xff]
    %v52 = vld [vmem:[%s1 + $0x138] sm:$0xff]
    %v53 = vld [vmem:[%s1 + $0x140] sm:$0xff]
    %v54 = vld [vmem:[%s1 + $0x148] sm:$0xff]
    %v55 = vld [vmem:[%s1 + $0x150] sm:$0xff]
    %v56 = vld [vmem:[%s1 + $0x158] sm:$0xff]
    %v57 = vld [vmem:[%s1 + $0x160] sm:$0xff]
    %v58 = vld [vmem:[%s1 + $0x168] sm:$0xff]
    %v59 = vld [vmem:[%s1 + $0x170] sm:$0xff]
    %v60 = vld [vmem:[%s1 + $0x178] sm:$0xff]
    %v61 = vld [vmem:[%s1 + $0x180] sm:$0xff]
    %v62 = vld [vmem:[%s1 + $0x188] sm:$0xff]
    %v63 = vld [vmem:[%s1 + $0x190] sm:$0xff]
    %v64 = vld [vmem:[%s1 + $0x198] sm:$0xff]
    %v65 = vld [vmem:[%s1 + $0x1a0] sm:$0xff]
    %v66 = vld [vmem:[%s1 + $0x1a8] sm:$0xff]
    %v67 = vld [vmem:[%s1 + $0x1b0] sm:$0xff]
    %v68 = vld [vmem:[%s1 + $0x1b8] sm:$0xff]
    %v69 = vld [vmem:[%s1 + $0x1c0] sm:$0xff]
    %v70 = vld [vmem:[%s1 + $0x1c8] sm:$0xff]
    %v71 = vld [vmem:[%s1 + $0x1d0] sm:$0xff]
    %v72 = vld [vmem:[%s1 + $0x1d8] sm:$0xff]
    %v73 = vld [vmem:[%s1 + $0x1e0] sm:$0xff]
    %v74 = vld [vmem:[%s1 + $0x1e8] sm:$0xff]
    %v75 = vld [vmem:[%s1 + $0x1f0] sm:$0xff]
    %v76 = vld [vmem:[%s1 + $0x1f8] sm:$0xff]
    %v78 = vlaneseq
    %v79 = vshrl.u32 %v78, 7
    %v80 = vsub.s32 0, %v79
    %v81 = vrot.slane %v12, %v80
    %v82 = vlaneseq
    %v83 = vshrl.u32 %v82, 7
    %v84 = vsub.s32 1, %v83
    %v85 = vrot.slane %v12, %v84
    %v86 = vlaneseq
    %v87 = vshrl.u32 %v86, 7
    %v88 = vsub.s32 2, %v87
    %v89 = vrot.slane %v12, %v88
    %v90 = vlaneseq
    %v91 = vshrl.u32 %v90, 7
    %v92 = vsub.s32 3, %v91
    %v93 = vrot.slane %v12, %v92
    %98 = vmatprep.subr.mxu0 0.0
    %v99 = vand.u32 %v13, 4294901760
    %100 = vmatpush1.msra.mxu0 %v99
    %101 = vmatprep.subr.mxu0 0.0
    %v102 = vand.u32 %v14, 4294901760
    %103 = vmatpush1.msra.mxu0 %v102
    %104 = vmatprep.subr.mxu0 0.0
    %v105 = vand.u32 %v15, 4294901760
    %106 = vmatpush1.msra.mxu0 %v105
    %107 = vmatprep.subr.mxu0 0.0
    %v108 = vand.u32 %v16, 4294901760
    %109 = vmatpush1.msra.mxu0 %v108
    %110 = vmatprep.subr.mxu0 0.0
    %v111 = vand.u32 %v17, 4294901760
    %112 = vmatpush1.msra.mxu0 %v111
    %113 = vmatprep.subr.mxu0 0.0
    %v114 = vand.u32 %v18, 4294901760
    %115 = vmatpush1.msra.mxu0 %v114
    %116 = vmatprep.subr.mxu0 0.0
    %v117 = vand.u32 %v19, 4294901760
    %118 = vmatpush1.msra.mxu0 %v117
    %119 = vmatprep.subr.mxu0 0.0
    %v120 = vand.u32 %v20, 4294901760
    %121 = vmatpush1.msra.mxu0 %v120
    %122 = vmatprep.subr.mxu0 0.0
    %v123 = vand.u32 %v21, 4294901760
    %124 = vmatpush1.msra.mxu0 %v123
    %125 = vmatprep.subr.mxu0 0.0
    %v126 = vand.u32 %v22, 4294901760
    %127 = vmatpush1.msra.mxu0 %v126
    %128 = vmatprep.subr.mxu0 0.0
    %v129 = vand.u32 %v23, 4294901760
    %130 = vmatpush1.msra.mxu0 %v129
    %131 = vmatprep.subr.mxu0 0.0
    %v132 = vand.u32 %v24, 4294901760
    %133 = vmatpush1.msra.mxu0 %v132
    %134 = vmatprep.subr.mxu0 0.0
    %v135 = vand.u32 %v25, 4294901760
    %136 = vmatpush1.msra.mxu0 %v135
    %137 = vmatprep.subr.mxu0 0.0
    %v138 = vand.u32 %v26, 4294901760
    %139 = vmatpush1.msra.mxu0 %v138
    %140 = vmatprep.subr.mxu0 0.0
    %v141 = vand.u32 %v27, 4294901760
    %142 = vmatpush1.msra.mxu0 %v141
    %143 = vmatprep.subr.mxu0 0.0
    %v144 = vand.u32 %v28, 4294901760
    %145 = vmatpush1.msra.mxu0 %v144
    %146 = vmatprep.subr.mxu0 0.0
    %v147 = vand.u32 %v29, 4294901760
    %148 = vmatpush1.msra.mxu0 %v147
    %149 = vmatprep.subr.mxu0 0.0
    %v150 = vand.u32 %v30, 4294901760
    %151 = vmatpush1.msra.mxu0 %v150
    %152 = vmatprep.subr.mxu0 0.0
    %v153 = vand.u32 %v31, 4294901760
    %154 = vmatpush1.msra.mxu0 %v153
    %155 = vmatprep.subr.mxu0 0.0
    %v156 = vand.u32 %v32, 4294901760
    %157 = vmatpush1.msra.mxu0 %v156
    %158 = vmatprep.subr.mxu0 0.0
    %v159 = vand.u32 %v33, 4294901760
    %160 = vmatpush1.msra.mxu0 %v159
    %161 = vmatprep.subr.mxu0 0.0
    %v162 = vand.u32 %v34, 4294901760
    %163 = vmatpush1.msra.mxu0 %v162
    %164 = vmatprep.subr.mxu0 0.0
    %v165 = vand.u32 %v35, 4294901760
    %166 = vmatpush1.msra.mxu0 %v165
    %167 = vmatprep.subr.mxu0 0.0
    %v168 = vand.u32 %v36, 4294901760
    %169 = vmatpush1.msra.mxu0 %v168
    %170 = vmatprep.subr.mxu0 0.0
    %v171 = vand.u32 %v37, 4294901760
    %172 = vmatpush1.msra.mxu0 %v171
    %173 = vmatprep.subr.mxu0 0.0
    %v174 = vand.u32 %v38, 4294901760
    %175 = vmatpush1.msra.mxu0 %v174
    %176 = vmatprep.subr.mxu0 0.0
    %v177 = vand.u32 %v39, 4294901760
    %178 = vmatpush1.msra.mxu0 %v177
    %179 = vmatprep.subr.mxu0 0.0
    %v180 = vand.u32 %v40, 4294901760
    %181 = vmatpush1.msra.mxu0 %v180
    %182 = vmatprep.subr.mxu0 0.0
    %v183 = vand.u32 %v41, 4294901760
    %184 = vmatpush1.msra.mxu0 %v183
    %185 = vmatprep.subr.mxu0 0.0
    %v186 = vand.u32 %v42, 4294901760
    %187 = vmatpush1.msra.mxu0 %v186
    %188 = vmatprep.subr.mxu0 0.0
    %v189 = vand.u32 %v43, 4294901760
    %190 = vmatpush1.msra.mxu0 %v189
    %191 = vmatprep.subr.mxu0 0.0
    %v192 = vand.u32 %v44, 4294901760
    %193 = vmatpush1.msra.mxu0 %v192
    %v194 = vand.u32 %v85, 4294901760
    %v195 = vsub.f32 %v85, %v194
    %v196 = vand.u32 %v195, 4294901760
    %v197 = vsub.f32 %v195, %v196
    %v198 = vand.u32 %v197, 4294901760
    %199 = vmatprep.mubr.f32.mxu0 %v198
    %v200 = vand.u32 %v81, 4294901760
    %v201 = vsub.f32 %v81, %v200
    %v202 = vand.u32 %v201, 4294901760
    %v203 = vsub.f32 %v201, %v202
    %v204 = vand.u32 %v203, 4294901760
    %205 = vmatmul.mubr.f32.gmra.mrb[0].mxu0 %v204
    %v206 = vpop.f32.mrb[0].mxu0
    %v207 = vadd.f32 0.0, %v206
    %v208 = vpop.f32.mrb[0].mxu0
    %209 = vdwg.mxu0
    %210 = vmatprep.subr.mxu0 0.0
    %v211 = vand.u32 %v13, 4294901760
    %v212 = vsub.f32 %v13, %v211
    %v213 = vand.u32 %v212, 4294901760
    %v214 = vsub.f32 %v212, %v213
    %v215 = vand.u32 %v214, 4294901760
    %216 = vmatpush1.msra.mxu0 %v215
    %217 = vmatprep.subr.mxu0 0.0
    %v218 = vand.u32 %v14, 4294901760
    %v219 = vsub.f32 %v14, %v218
    %v220 = vand.u32 %v219, 4294901760
    %v221 = vsub.f32 %v219, %v220
    %v222 = vand.u32 %v221, 4294901760
    %223 = vmatpush1.msra.mxu0 %v222
    %224 = vmatprep.subr.mxu0 0.0
    %v225 = vand.u32 %v15, 4294901760
    %v226 = vsub.f32 %v15, %v225
    %v227 = vand.u32 %v226, 4294901760
    %v228 = vsub.f32 %v226, %v227
    %v229 = vand.u32 %v228, 4294901760
    %230 = vmatpush1.msra.mxu0 %v229
    %231 = vmatprep.subr.mxu0 0.0
    %v232 = vand.u32 %v16, 4294901760
    %v233 = vsub.f32 %v16, %v232
    %v234 = vand.u32 %v233, 4294901760
    %v235 = vsub.f32 %v233, %v234
    %v236 = vand.u32 %v235, 4294901760
    %237 = vmatpush1.msra.mxu0 %v236
    %238 = vmatprep.subr.mxu0 0.0
    %v239 = vand.u32 %v17, 4294901760
    %v240 = vsub.f32 %v17, %v239
    %v241 = vand.u32 %v240, 4294901760
    %v242 = vsub.f32 %v240, %v241
    %v243 = vand.u32 %v242, 4294901760
    %244 = vmatpush1.msra.mxu0 %v243
    %245 = vmatprep.subr.mxu0 0.0
    %v246 = vand.u32 %v18, 4294901760
    %v247 = vsub.f32 %v18, %v246
    %v248 = vand.u32 %v247, 4294901760
    %v249 = vsub.f32 %v247, %v248
    %v250 = vand.u32 %v249, 4294901760
    %251 = vmatpush1.msra.mxu0 %v250
    %252 = vmatprep.subr.mxu0 0.0
    %v253 = vand.u32 %v19, 4294901760
    %v254 = vsub.f32 %v19, %v253
    %v255 = vand.u32 %v254, 4294901760
    %v256 = vsub.f32 %v254, %v255
    %v257 = vand.u32 %v256, 4294901760
    %258 = vmatpush1.msra.mxu0 %v257
    %259 = vmatprep.subr.mxu0 0.0
    %v260 = vand.u32 %v20, 4294901760
    %v261 = vsub.f32 %v20, %v260
    %v262 = vand.u32 %v261, 4294901760
    %v263 = vsub.f32 %v261, %v262
    %v264 = vand.u32 %v263, 4294901760
    %265 = vmatpush1.msra.mxu0 %v264
    %266 = vmatprep.subr.mxu0 0.0
    %v267 = vand.u32 %v21, 4294901760
    %v268 = vsub.f32 %v21, %v267
    %v269 = vand.u32 %v268, 4294901760
    %v270 = vsub.f32 %v268, %v269
    %v271 = vand.u32 %v270, 4294901760
    %272 = vmatpush1.msra.mxu0 %v271
    %273 = vmatprep.subr.mxu0 0.0
    %v274 = vand.u32 %v22, 4294901760
    %v275 = vsub.f32 %v22, %v274
    %v276 = vand.u32 %v275, 4294901760
    %v277 = vsub.f32 %v275, %v276
    %v278 = vand.u32 %v277, 4294901760
    %279 = vmatpush1.msra.mxu0 %v278
    %280 = vmatprep.subr.mxu0 0.0
    %v281 = vand.u32 %v23, 4294901760
    %v282 = vsub.f32 %v23, %v281
    %v283 = vand.u32 %v282, 4294901760
    %v284 = vsub.f32 %v282, %v283
    %v285 = vand.u32 %v284, 4294901760
    %286 = vmatpush1.msra.mxu0 %v285
    %287 = vmatprep.subr.mxu0 0.0
    %v288 = vand.u32 %v24, 4294901760
    %v289 = vsub.f32 %v24, %v288
    %v290 = vand.u32 %v289, 4294901760
    %v291 = vsub.f32 %v289, %v290
    %v292 = vand.u32 %v291, 4294901760
    %293 = vmatpush1.msra.mxu0 %v292
    %294 = vmatprep.subr.mxu0 0.0
    %v295 = vand.u32 %v25, 4294901760
    %v296 = vsub.f32 %v25, %v295
    %v297 = vand.u32 %v296, 4294901760
    %v298 = vsub.f32 %v296, %v297
    %v299 = vand.u32 %v298, 4294901760
    %300 = vmatpush1.msra.mxu0 %v299
    %301 = vmatprep.subr.mxu0 0.0
    %v302 = vand.u32 %v26, 4294901760
    %v303 = vsub.f32 %v26, %v302
    %v304 = vand.u32 %v303, 4294901760
    %v305 = vsub.f32 %v303, %v304
    %v306 = vand.u32 %v305, 4294901760
    %307 = vmatpush1.msra.mxu0 %v306
    %308 = vmatprep.subr.mxu0 0.0
    %v309 = vand.u32 %v27, 4294901760
    %v310 = vsub.f32 %v27, %v309
    %v311 = vand.u32 %v310, 4294901760
    %v312 = vsub.f32 %v310, %v311
    %v313 = vand.u32 %v312, 4294901760
    %314 = vmatpush1.msra.mxu0 %v313
    %315 = vmatprep.subr.mxu0 0.0
    %v316 = vand.u32 %v28, 4294901760
    %v317 = vsub.f32 %v28, %v316
    %v318 = vand.u32 %v317, 4294901760
    %v319 = vsub.f32 %v317, %v318
    %v320 = vand.u32 %v319, 4294901760
    %321 = vmatpush1.msra.mxu0 %v320
    %322 = vmatprep.subr.mxu0 0.0
    %v323 = vand.u32 %v29, 4294901760
    %v324 = vsub.f32 %v29, %v323
    %v325 = vand.u32 %v324, 4294901760
    %v326 = vsub.f32 %v324, %v325
    %v327 = vand.u32 %v326, 4294901760
    %328 = vmatpush1.msra.mxu0 %v327
    %329 = vmatprep.subr.mxu0 0.0
    %v330 = vand.u32 %v30, 4294901760
    %v331 = vsub.f32 %v30, %v330
    %v332 = vand.u32 %v331, 4294901760
    %v333 = vsub.f32 %v331, %v332
    %v334 = vand.u32 %v333, 4294901760
    %335 = vmatpush1.msra.mxu0 %v334
    %336 = vmatprep.subr.mxu0 0.0
    %v337 = vand.u32 %v31, 4294901760
    %v338 = vsub.f32 %v31, %v337
    %v339 = vand.u32 %v338, 4294901760
    %v340 = vsub.f32 %v338, %v339
    %v341 = vand.u32 %v340, 4294901760
    %342 = vmatpush1.msra.mxu0 %v341
    %343 = vmatprep.subr.mxu0 0.0
    %v344 = vand.u32 %v32, 4294901760
    %v345 = vsub.f32 %v32, %v344
    %v346 = vand.u32 %v345, 4294901760
    %v347 = vsub.f32 %v345, %v346
    %v348 = vand.u32 %v347, 4294901760
    %349 = vmatpush1.msra.mxu0 %v348
    %350 = vmatprep.subr.mxu0 0.0
    %v351 = vand.u32 %v33, 4294901760
    %v352 = vsub.f32 %v33, %v351
    %v353 = vand.u32 %v352, 4294901760
    %v354 = vsub.f32 %v352, %v353
    %v355 = vand.u32 %v354, 4294901760
    %356 = vmatpush1.msra.mxu0 %v355
    %357 = vmatprep.subr.mxu0 0.0
    %v358 = vand.u32 %v34, 4294901760
    %v359 = vsub.f32 %v34, %v358
    %v360 = vand.u32 %v359, 4294901760
    %v361 = vsub.f32 %v359, %v360
    %v362 = vand.u32 %v361, 4294901760
    %363 = vmatpush1.msra.mxu0 %v362
    %364 = vmatprep.subr.mxu0 0.0
    %v365 = vand.u32 %v35, 4294901760
    %v366 = vsub.f32 %v35, %v365
    %v367 = vand.u32 %v366, 4294901760
    %v368 = vsub.f32 %v366, %v367
    %v369 = vand.u32 %v368, 4294901760
    %370 = vmatpush1.msra.mxu0 %v369
    %371 = vmatprep.subr.mxu0 0.0
    %v372 = vand.u32 %v36, 4294901760
    %v373 = vsub.f32 %v36, %v372
    %v374 = vand.u32 %v373, 4294901760
    %v375 = vsub.f32 %v373, %v374
    %v376 = vand.u32 %v375, 4294901760
    %377 = vmatpush1.msra.mxu0 %v376
    %378 = vmatprep.subr.mxu0 0.0
    %v379 = vand.u32 %v37, 4294901760
    %v380 = vsub.f32 %v37, %v379
    %v381 = vand.u32 %v380, 4294901760
    %v382 = vsub.f32 %v380, %v381
    %v383 = vand.u32 %v382, 4294901760
    %384 = vmatpush1.msra.mxu0 %v383
    %385 = vmatprep.subr.mxu0 0.0
    %v386 = vand.u32 %v38, 4294901760
    %v387 = vsub.f32 %v38, %v386
    %v388 = vand.u32 %v387, 4294901760
    %v389 = vsub.f32 %v387, %v388
    %v390 = vand.u32 %v389, 4294901760
    %391 = vmatpush1.msra.mxu0 %v390
    %392 = vmatprep.subr.mxu0 0.0
    %v393 = vand.u32 %v39, 4294901760
    %v394 = vsub.f32 %v39, %v393
    %v395 = vand.u32 %v394, 4294901760
    %v396 = vsub.f32 %v394, %v395
    %v397 = vand.u32 %v396, 4294901760
    %398 = vmatpush1.msra.mxu0 %v397
    %399 = vmatprep.subr.mxu0 0.0
    %v400 = vand.u32 %v40, 4294901760
    %v401 = vsub.f32 %v40, %v400
    %v402 = vand.u32 %v401, 4294901760
    %v403 = vsub.f32 %v401, %v402
    %v404 = vand.u32 %v403, 4294901760
    %405 = vmatpush1.msra.mxu0 %v404
    %406 = vmatprep.subr.mxu0 0.0
    %v407 = vand.u32 %v41, 4294901760
    %v408 = vsub.f32 %v41, %v407
    %v409 = vand.u32 %v408, 4294901760
    %v410 = vsub.f32 %v408, %v409
    %v411 = vand.u32 %v410, 4294901760
    %412 = vmatpush1.msra.mxu0 %v411
    %413 = vmatprep.subr.mxu0 0.0
    %v414 = vand.u32 %v42, 4294901760
    %v415 = vsub.f32 %v42, %v414
    %v416 = vand.u32 %v415, 4294901760
    %v417 = vsub.f32 %v415, %v416
    %v418 = vand.u32 %v417, 4294901760
    %419 = vmatpush1.msra.mxu0 %v418
    %420 = vmatprep.subr.mxu0 0.0
    %v421 = vand.u32 %v43, 4294901760
    %v422 = vsub.f32 %v43, %v421
    %v423 = vand.u32 %v422, 4294901760
    %v424 = vsub.f32 %v422, %v423
    %v425 = vand.u32 %v424, 4294901760
    %426 = vmatpush1.msra.mxu0 %v425
    %427 = vmatprep.subr.mxu0 0.0
    %v428 = vand.u32 %v44, 4294901760
    %v429 = vsub.f32 %v44, %v428
    %v430 = vand.u32 %v429, 4294901760
    %v431 = vsub.f32 %v429, %v430
    %v432 = vand.u32 %v431, 4294901760
    %433 = vmatpush1.msra.mxu0 %v432
    %v434 = vand.u32 %v85, 4294901760
    %435 = vmatprep.mubr.f32.mxu0 %v434
    %v436 = vand.u32 %v81, 4294901760
    %437 = vmatmul.mubr.f32.gmra.mrb[0].mxu0 %v436
    %v438 = vpop.f32.mrb[0].mxu0
    %v439 = vadd.f32 %v207, %v438
    %v440 = vpop.f32.mrb[0].mxu0
    %441 = vdwg.mxu0
    %442 = vmatprep.subr.mxu0 0.0
    %v443 = vand.u32 %v13, 4294901760
    %v444 = vsub.f32 %v13, %v443
    %445 = vmatpush1.msra.mxu0 %v444
    %446 = vmatprep.subr.mxu0 0.0
    %v447 = vand.u32 %v14, 4294901760
    %v448 = vsub.f32 %v14, %v447
    %449 = vmatpush1.msra.mxu0 %v448
    %450 = vmatprep.subr.mxu0 0.0
    %v451 = vand.u32 %v15, 4294901760
    %v452 = vsub.f32 %v15, %v451
    %453 = vmatpush1.msra.mxu0 %v452
    %454 = vmatprep.subr.mxu0 0.0
    %v455 = vand.u32 %v16, 4294901760
    %v456 = vsub.f32 %v16, %v455
    %457 = vmatpush1.msra.mxu0 %v456
    %458 = vmatprep.subr.mxu0 0.0
    %v459 = vand.u32 %v17, 4294901760
    %v460 = vsub.f32 %v17, %v459
    %461 = vmatpush1.msra.mxu0 %v460
    %462 = vmatprep.subr.mxu0 0.0
    %v463 = vand.u32 %v18, 4294901760
    %v464 = vsub.f32 %v18, %v463
    %465 = vmatpush1.msra.mxu0 %v464
    %466 = vmatprep.subr.mxu0 0.0
    %v467 = vand.u32 %v19, 4294901760
    %v468 = vsub.f32 %v19, %v467
    %469 = vmatpush1.msra.mxu0 %v468
    %470 = vmatprep.subr.mxu0 0.0
    %v471 = vand.u32 %v20, 4294901760
    %v472 = vsub.f32 %v20, %v471
    %473 = vmatpush1.msra.mxu0 %v472
    %474 = vmatprep.subr.mxu0 0.0
    %v475 = vand.u32 %v21, 4294901760
    %v476 = vsub.f32 %v21, %v475
    %477 = vmatpush1.msra.mxu0 %v476
    %478 = vmatprep.subr.mxu0 0.0
    %v479 = vand.u32 %v22, 4294901760
    %v480 = vsub.f32 %v22, %v479
    %481 = vmatpush1.msra.mxu0 %v480
    %482 = vmatprep.subr.mxu0 0.0
    %v483 = vand.u32 %v23, 4294901760
    %v484 = vsub.f32 %v23, %v483
    %485 = vmatpush1.msra.mxu0 %v484
    %486 = vmatprep.subr.mxu0 0.0
    %v487 = vand.u32 %v24, 4294901760
    %v488 = vsub.f32 %v24, %v487
    %489 = vmatpush1.msra.mxu0 %v488
    %490 = vmatprep.subr.mxu0 0.0
    %v491 = vand.u32 %v25, 4294901760
    %v492 = vsub.f32 %v25, %v491
    %493 = vmatpush1.msra.mxu0 %v492
    %494 = vmatprep.subr.mxu0 0.0
    %v495 = vand.u32 %v26, 4294901760
    %v496 = vsub.f32 %v26, %v495
    %497 = vmatpush1.msra.mxu0 %v496
    %498 = vmatprep.subr.mxu0 0.0
    %v499 = vand.u32 %v27, 4294901760
    %v500 = vsub.f32 %v27, %v499
    %501 = vmatpush1.msra.mxu0 %v500
    %502 = vmatprep.subr.mxu0 0.0
    %v503 = vand.u32 %v28, 4294901760
    %v504 = vsub.f32 %v28, %v503
    %505 = vmatpush1.msra.mxu0 %v504
    %506 = vmatprep.subr.mxu0 0.0
    %v507 = vand.u32 %v29, 4294901760
    %v508 = vsub.f32 %v29, %v507
    %509 = vmatpush1.msra.mxu0 %v508
    %510 = vmatprep.subr.mxu0 0.0
    %v511 = vand.u32 %v30, 4294901760
    %v512 = vsub.f32 %v30, %v511
    %513 = vmatpush1.msra.mxu0 %v512
    %514 = vmatprep.subr.mxu0 0.0
    %v515 = vand.u32 %v31, 4294901760
    %v516 = vsub.f32 %v31, %v515
    %517 = vmatpush1.msra.mxu0 %v516
    %518 = vmatprep.subr.mxu0 0.0
    %v519 = vand.u32 %v32, 4294901760
    %v520 = vsub.f32 %v32, %v519
    %521 = vmatpush1.msra.mxu0 %v520
    %522 = vmatprep.subr.mxu0 0.0
    %v523 = vand.u32 %v33, 4294901760
    %v524 = vsub.f32 %v33, %v523
    %525 = vmatpush1.msra.mxu0 %v524
    %526 = vmatprep.subr.mxu0 0.0
    %v527 = vand.u32 %v34, 4294901760
    %v528 = vsub.f32 %v34, %v527
    %529 = vmatpush1.msra.mxu0 %v528
    %530 = vmatprep.subr.mxu0 0.0
    %v531 = vand.u32 %v35, 4294901760
    %v532 = vsub.f32 %v35, %v531
    %533 = vmatpush1.msra.mxu0 %v532
    %534 = vmatprep.subr.mxu0 0.0
    %v535 = vand.u32 %v36, 4294901760
    %v536 = vsub.f32 %v36, %v535
    %537 = vmatpush1.msra.mxu0 %v536
    %538 = vmatprep.subr.mxu0 0.0
    %v539 = vand.u32 %v37, 4294901760
    %v540 = vsub.f32 %v37, %v539
    %541 = vmatpush1.msra.mxu0 %v540
    %542 = vmatprep.subr.mxu0 0.0
    %v543 = vand.u32 %v38, 4294901760
    %v544 = vsub.f32 %v38, %v543
    %545 = vmatpush1.msra.mxu0 %v544
    %546 = vmatprep.subr.mxu0 0.0
    %v547 = vand.u32 %v39, 4294901760
    %v548 = vsub.f32 %v39, %v547
    %549 = vmatpush1.msra.mxu0 %v548
    %550 = vmatprep.subr.mxu0 0.0
    %v551 = vand.u32 %v40, 4294901760
    %v552 = vsub.f32 %v40, %v551
    %553 = vmatpush1.msra.mxu0 %v552
    %554 = vmatprep.subr.mxu0 0.0
    %v555 = vand.u32 %v41, 4294901760
    %v556 = vsub.f32 %v41, %v555
    %557 = vmatpush1.msra.mxu0 %v556
    %558 = vmatprep.subr.mxu0 0.0
    %v559 = vand.u32 %v42, 4294901760
    %v560 = vsub.f32 %v42, %v559
    %561 = vmatpush1.msra.mxu0 %v560
    %562 = vmatprep.subr.mxu0 0.0
    %v563 = vand.u32 %v43, 4294901760
    %v564 = vsub.f32 %v43, %v563
    %565 = vmatpush1.msra.mxu0 %v564
    %566 = vmatprep.subr.mxu0 0.0
    %v567 = vand.u32 %v44, 4294901760
    %v568 = vsub.f32 %v44, %v567
    %569 = vmatpush1.msra.mxu0 %v568
    %v570 = vand.u32 %v85, 4294901760
    %v571 = vsub.f32 %v85, %v570
    %572 = vmatprep.mubr.f32.mxu0 %v571
    %v573 = vand.u32 %v81, 4294901760
    %v574 = vsub.f32 %v81, %v573
    %575 = vmatmul.mubr.f32.gmra.mrb[0].mxu0 %v574
    %v576 = vpop.f32.mrb[0].mxu0
    %v577 = vadd.f32 %v439, %v576
    %v578 = vpop.f32.mrb[0].mxu0
    %579 = vdwg.mxu0
    %580 = vmatprep.subr.mxu0 0.0
    %v581 = vand.u32 %v13, 4294901760
    %582 = vmatpush1.msra.mxu0 %v581
    %583 = vmatprep.subr.mxu0 0.0
    %v584 = vand.u32 %v14, 4294901760
    %585 = vmatpush1.msra.mxu0 %v584
    %586 = vmatprep.subr.mxu0 0.0
    %v587 = vand.u32 %v15, 4294901760
    %588 = vmatpush1.msra.mxu0 %v587
    %589 = vmatprep.subr.mxu0 0.0
    %v590 = vand.u32 %v16, 4294901760
    %591 = vmatpush1.msra.mxu0 %v590
    %592 = vmatprep.subr.mxu0 0.0
    %v593 = vand.u32 %v17, 4294901760
    %594 = vmatpush1.msra.mxu0 %v593
    %595 = vmatprep.subr.mxu0 0.0
    %v596 = vand.u32 %v18, 4294901760
    %597 = vmatpush1.msra.mxu0 %v596
    %598 = vmatprep.subr.mxu0 0.0
    %v599 = vand.u32 %v19, 4294901760
    %600 = vmatpush1.msra.mxu0 %v599
    %601 = vmatprep.subr.mxu0 0.0
    %v602 = vand.u32 %v20, 4294901760
    %603 = vmatpush1.msra.mxu0 %v602
    %604 = vmatprep.subr.mxu0 0.0
    %v605 = vand.u32 %v21, 4294901760
    %606 = vmatpush1.msra.mxu0 %v605
    %607 = vmatprep.subr.mxu0 0.0
    %v608 = vand.u32 %v22, 4294901760
    %609 = vmatpush1.msra.mxu0 %v608
    %610 = vmatprep.subr.mxu0 0.0
    %v611 = vand.u32 %v23, 4294901760
    %612 = vmatpush1.msra.mxu0 %v611
    %613 = vmatprep.subr.mxu0 0.0
    %v614 = vand.u32 %v24, 4294901760
    %615 = vmatpush1.msra.mxu0 %v614
    %616 = vmatprep.subr.mxu0 0.0
    %v617 = vand.u32 %v25, 4294901760
    %618 = vmatpush1.msra.mxu0 %v617
    %619 = vmatprep.subr.mxu0 0.0
    %v620 = vand.u32 %v26, 4294901760
    %621 = vmatpush1.msra.mxu0 %v620
    %622 = vmatprep.subr.mxu0 0.0
    %v623 = vand.u32 %v27, 4294901760
    %624 = vmatpush1.msra.mxu0 %v623
    %625 = vmatprep.subr.mxu0 0.0
    %v626 = vand.u32 %v28, 4294901760
    %627 = vmatpush1.msra.mxu0 %v626
    %628 = vmatprep.subr.mxu0 0.0
    %v629 = vand.u32 %v29, 4294901760
    %630 = vmatpush1.msra.mxu0 %v629
    %631 = vmatprep.subr.mxu0 0.0
    %v632 = vand.u32 %v30, 4294901760
    %633 = vmatpush1.msra.mxu0 %v632
    %634 = vmatprep.subr.mxu0 0.0
    %v635 = vand.u32 %v31, 4294901760
    %636 = vmatpush1.msra.mxu0 %v635
    %637 = vmatprep.subr.mxu0 0.0
    %v638 = vand.u32 %v32, 4294901760
    %639 = vmatpush1.msra.mxu0 %v638
    %640 = vmatprep.subr.mxu0 0.0
    %v641 = vand.u32 %v33, 4294901760
    %642 = vmatpush1.msra.mxu0 %v641
    %643 = vmatprep.subr.mxu0 0.0
    %v644 = vand.u32 %v34, 4294901760
    %645 = vmatpush1.msra.mxu0 %v644
    %646 = vmatprep.subr.mxu0 0.0
    %v647 = vand.u32 %v35, 4294901760
    %648 = vmatpush1.msra.mxu0 %v647
    %649 = vmatprep.subr.mxu0 0.0
    %v650 = vand.u32 %v36, 4294901760
    %651 = vmatpush1.msra.mxu0 %v650
    %652 = vmatprep.subr.mxu0 0.0
    %v653 = vand.u32 %v37, 4294901760
    %654 = vmatpush1.msra.mxu0 %v653
    %655 = vmatprep.subr.mxu0 0.0
    %v656 = vand.u32 %v38, 4294901760
    %657 = vmatpush1.msra.mxu0 %v656
    %658 = vmatprep.subr.mxu0 0.0
    %v659 = vand.u32 %v39, 4294901760
    %660 = vmatpush1.msra.mxu0 %v659
    %661 = vmatprep.subr.mxu0 0.0
    %v662 = vand.u32 %v40, 4294901760
    %663 = vmatpush1.msra.mxu0 %v662
    %664 = vmatprep.subr.mxu0 0.0
    %v665 = vand.u32 %v41, 4294901760
    %666 = vmatpush1.msra.mxu0 %v665
    %667 = vmatprep.subr.mxu0 0.0
    %v668 = vand.u32 %v42, 4294901760
    %669 = vmatpush1.msra.mxu0 %v668
    %670 = vmatprep.subr.mxu0 0.0
    %v671 = vand.u32 %v43, 4294901760
    %672 = vmatpush1.msra.mxu0 %v671
    %673 = vmatprep.subr.mxu0 0.0
    %v674 = vand.u32 %v44, 4294901760
    %675 = vmatpush1.msra.mxu0 %v674
    %v676 = vand.u32 %v85, 4294901760
    %v677 = vsub.f32 %v85, %v676
    %v678 = vand.u32 %v677, 4294901760
    %679 = vmatprep.mubr.f32.mxu0 %v678
    %v680 = vand.u32 %v81, 4294901760
    %v681 = vsub.f32 %v81, %v680
    %v682 = vand.u32 %v681, 4294901760
    %683 = vmatmul.mubr.f32.gmra.mrb[0].mxu0 %v682
    %v684 = vpop.f32.mrb[0].mxu0
    %v685 = vadd.f32 %v577, %v684
    %v686 = vpop.f32.mrb[0].mxu0
    %687 = vdwg.mxu0
    %688 = vmatprep.subr.mxu0 0.0
    %v689 = vand.u32 %v13, 4294901760
    %v690 = vsub.f32 %v13, %v689
    %v691 = vand.u32 %v690, 4294901760
    %692 = vmatpush1.msra.mxu0 %v691
    %693 = vmatprep.subr.mxu0 0.0
    %v694 = vand.u32 %v14, 4294901760
    %v695 = vsub.f32 %v14, %v694
    %v696 = vand.u32 %v695, 4294901760
    %697 = vmatpush1.msra.mxu0 %v696
    %698 = vmatprep.subr.mxu0 0.0
    %v699 = vand.u32 %v15, 4294901760
    %v700 = vsub.f32 %v15, %v699
    %v701 = vand.u32 %v700, 4294901760
    %702 = vmatpush1.msra.mxu0 %v701
    %703 = vmatprep.subr.mxu0 0.0
    %v704 = vand.u32 %v16, 4294901760
    %v705 = vsub.f32 %v16, %v704
    %v706 = vand.u32 %v705, 4294901760
    %707 = vmatpush1.msra.mxu0 %v706
    %708 = vmatprep.subr.mxu0 0.0
    %v709 = vand.u32 %v17, 4294901760
    %v710 = vsub.f32 %v17, %v709
    %v711 = vand.u32 %v710, 4294901760
    %712 = vmatpush1.msra.mxu0 %v711
    %713 = vmatprep.subr.mxu0 0.0
    %v714 = vand.u32 %v18, 4294901760
    %v715 = vsub.f32 %v18, %v714
    %v716 = vand.u32 %v715, 4294901760
    %717 = vmatpush1.msra.mxu0 %v716
    %718 = vmatprep.subr.mxu0 0.0
    %v719 = vand.u32 %v19, 4294901760
    %v720 = vsub.f32 %v19, %v719
    %v721 = vand.u32 %v720, 4294901760
    %722 = vmatpush1.msra.mxu0 %v721
    %723 = vmatprep.subr.mxu0 0.0
    %v724 = vand.u32 %v20, 4294901760
    %v725 = vsub.f32 %v20, %v724
    %v726 = vand.u32 %v725, 4294901760
    %727 = vmatpush1.msra.mxu0 %v726
    %728 = vmatprep.subr.mxu0 0.0
    %v729 = vand.u32 %v21, 4294901760
    %v730 = vsub.f32 %v21, %v729
    %v731 = vand.u32 %v730, 4294901760
    %732 = vmatpush1.msra.mxu0 %v731
    %733 = vmatprep.subr.mxu0 0.0
    %v734 = vand.u32 %v22, 4294901760
    %v735 = vsub.f32 %v22, %v734
    %v736 = vand.u32 %v735, 4294901760
    %737 = vmatpush1.msra.mxu0 %v736
    %738 = vmatprep.subr.mxu0 0.0
    %v739 = vand.u32 %v23, 4294901760
    %v740 = vsub.f32 %v23, %v739
    %v741 = vand.u32 %v740, 4294901760
    %742 = vmatpush1.msra.mxu0 %v741
    %743 = vmatprep.subr.mxu0 0.0
    %v744 = vand.u32 %v24, 4294901760
    %v745 = vsub.f32 %v24, %v744
    %v746 = vand.u32 %v745, 4294901760
    %747 = vmatpush1.msra.mxu0 %v746
    %748 = vmatprep.subr.mxu0 0.0
    %v749 = vand.u32 %v25, 4294901760
    %v750 = vsub.f32 %v25, %v749
    %v751 = vand.u32 %v750, 4294901760
    %752 = vmatpush1.msra.mxu0 %v751
    %753 = vmatprep.subr.mxu0 0.0
    %v754 = vand.u32 %v26, 4294901760
    %v755 = vsub.f32 %v26, %v754
    %v756 = vand.u32 %v755, 4294901760
    %757 = vmatpush1.msra.mxu0 %v756
    %758 = vmatprep.subr.mxu0 0.0
    %v759 = vand.u32 %v27, 4294901760
    %v760 = vsub.f32 %v27, %v759
    %v761 = vand.u32 %v760, 4294901760
    %762 = vmatpush1.msra.mxu0 %v761
    %763 = vmatprep.subr.mxu0 0.0
    %v764 = vand.u32 %v28, 4294901760
    %v765 = vsub.f32 %v28, %v764
    %v766 = vand.u32 %v765, 4294901760
    %767 = vmatpush1.msra.mxu0 %v766
    %768 = vmatprep.subr.mxu0 0.0
    %v769 = vand.u32 %v29, 4294901760
    %v770 = vsub.f32 %v29, %v769
    %v771 = vand.u32 %v770, 4294901760
    %772 = vmatpush1.msra.mxu0 %v771
    %773 = vmatprep.subr.mxu0 0.0
    %v774 = vand.u32 %v30, 4294901760
    %v775 = vsub.f32 %v30, %v774
    %v776 = vand.u32 %v775, 4294901760
    %777 = vmatpush1.msra.mxu0 %v776
    %778 = vmatprep.subr.mxu0 0.0
    %v779 = vand.u32 %v31, 4294901760
    %v780 = vsub.f32 %v31, %v779
    %v781 = vand.u32 %v780, 4294901760
    %782 = vmatpush1.msra.mxu0 %v781
    %783 = vmatprep.subr.mxu0 0.0
    %v784 = vand.u32 %v32, 4294901760
    %v785 = vsub.f32 %v32, %v784
    %v786 = vand.u32 %v785, 4294901760
    %787 = vmatpush1.msra.mxu0 %v786
    %788 = vmatprep.subr.mxu0 0.0
    %v789 = vand.u32 %v33, 4294901760
    %v790 = vsub.f32 %v33, %v789
    %v791 = vand.u32 %v790, 4294901760
    %792 = vmatpush1.msra.mxu0 %v791
    %793 = vmatprep.subr.mxu0 0.0
    %v794 = vand.u32 %v34, 4294901760
    %v795 = vsub.f32 %v34, %v794
    %v796 = vand.u32 %v795, 4294901760
    %797 = vmatpush1.msra.mxu0 %v796
    %798 = vmatprep.subr.mxu0 0.0
    %v799 = vand.u32 %v35, 4294901760
    %v800 = vsub.f32 %v35, %v799
    %v801 = vand.u32 %v800, 4294901760
    %802 = vmatpush1.msra.mxu0 %v801
    %803 = vmatprep.subr.mxu0 0.0
    %v804 = vand.u32 %v36, 4294901760
    %v805 = vsub.f32 %v36, %v804
    %v806 = vand.u32 %v805, 4294901760
    %807 = vmatpush1.msra.mxu0 %v806
    %808 = vmatprep.subr.mxu0 0.0
    %v809 = vand.u32 %v37, 4294901760
    %v810 = vsub.f32 %v37, %v809
    %v811 = vand.u32 %v810, 4294901760
    %812 = vmatpush1.msra.mxu0 %v811
    %813 = vmatprep.subr.mxu0 0.0
    %v814 = vand.u32 %v38, 4294901760
    %v815 = vsub.f32 %v38, %v814
    %v816 = vand.u32 %v815, 4294901760
    %817 = vmatpush1.msra.mxu0 %v816
    %818 = vmatprep.subr.mxu0 0.0
    %v819 = vand.u32 %v39, 4294901760
    %v820 = vsub.f32 %v39, %v819
    %v821 = vand.u32 %v820, 4294901760
    %822 = vmatpush1.msra.mxu0 %v821
    %823 = vmatprep.subr.mxu0 0.0
    %v824 = vand.u32 %v40, 4294901760
    %v825 = vsub.f32 %v40, %v824
    %v826 = vand.u32 %v825, 4294901760
    %827 = vmatpush1.msra.mxu0 %v826
    %828 = vmatprep.subr.mxu0 0.0
    %v829 = vand.u32 %v41, 4294901760
    %v830 = vsub.f32 %v41, %v829
    %v831 = vand.u32 %v830, 4294901760
    %832 = vmatpush1.msra.mxu0 %v831
    %833 = vmatprep.subr.mxu0 0.0
    %v834 = vand.u32 %v42, 4294901760
    %v835 = vsub.f32 %v42, %v834
    %v836 = vand.u32 %v835, 4294901760
    %837 = vmatpush1.msra.mxu0 %v836
    %838 = vmatprep.subr.mxu0 0.0
    %v839 = vand.u32 %v43, 4294901760
    %v840 = vsub.f32 %v43, %v839
    %v841 = vand.u32 %v840, 4294901760
    %842 = vmatpush1.msra.mxu0 %v841
    %843 = vmatprep.subr.mxu0 0.0
    %v844 = vand.u32 %v44, 4294901760
    %v845 = vsub.f32 %v44, %v844
    %v846 = vand.u32 %v845, 4294901760
    %847 = vmatpush1.msra.mxu0 %v846
    %v848 = vand.u32 %v85, 4294901760
    %849 = vmatprep.mubr.f32.mxu0 %v848
    %v850 = vand.u32 %v81, 4294901760
    %851 = vmatmul.mubr.f32.gmra.mrb[0].mxu0 %v850
    %v852 = vpop.f32.mrb[0].mxu0
    %v853 = vadd.f32 %v685, %v852
    %v854 = vpop.f32.mrb[0].mxu0
    %855 = vdwg.mxu0
    %856 = vmatprep.subr.mxu0 0.0
    %v857 = vand.u32 %v13, 4294901760
    %858 = vmatpush1.msra.mxu0 %v857
    %859 = vmatprep.subr.mxu0 0.0
    %v860 = vand.u32 %v14, 4294901760
    %861 = vmatpush1.msra.mxu0 %v860
    %862 = vmatprep.subr.mxu0 0.0
    %v863 = vand.u32 %v15, 4294901760
    %864 = vmatpush1.msra.mxu0 %v863
    %865 = vmatprep.subr.mxu0 0.0
    %v866 = vand.u32 %v16, 4294901760
    %867 = vmatpush1.msra.mxu0 %v866
    %868 = vmatprep.subr.mxu0 0.0
    %v869 = vand.u32 %v17, 4294901760
    %870 = vmatpush1.msra.mxu0 %v869
    %871 = vmatprep.subr.mxu0 0.0
    %v872 = vand.u32 %v18, 4294901760
    %873 = vmatpush1.msra.mxu0 %v872
    %874 = vmatprep.subr.mxu0 0.0
    %v875 = vand.u32 %v19, 4294901760
    %876 = vmatpush1.msra.mxu0 %v875
    %877 = vmatprep.subr.mxu0 0.0
    %v878 = vand.u32 %v20, 4294901760
    %879 = vmatpush1.msra.mxu0 %v878
    %880 = vmatprep.subr.mxu0 0.0
    %v881 = vand.u32 %v21, 4294901760
    %882 = vmatpush1.msra.mxu0 %v881
    %883 = vmatprep.subr.mxu0 0.0
    %v884 = vand.u32 %v22, 4294901760
    %885 = vmatpush1.msra.mxu0 %v884
    %886 = vmatprep.subr.mxu0 0.0
    %v887 = vand.u32 %v23, 4294901760
    %888 = vmatpush1.msra.mxu0 %v887
    %889 = vmatprep.subr.mxu0 0.0
    %v890 = vand.u32 %v24, 4294901760
    %891 = vmatpush1.msra.mxu0 %v890
    %892 = vmatprep.subr.mxu0 0.0
    %v893 = vand.u32 %v25, 4294901760
    %894 = vmatpush1.msra.mxu0 %v893
    %895 = vmatprep.subr.mxu0 0.0
    %v896 = vand.u32 %v26, 4294901760
    %897 = vmatpush1.msra.mxu0 %v896
    %898 = vmatprep.subr.mxu0 0.0
    %v899 = vand.u32 %v27, 4294901760
    %900 = vmatpush1.msra.mxu0 %v899
    %901 = vmatprep.subr.mxu0 0.0
    %v902 = vand.u32 %v28, 4294901760
    %903 = vmatpush1.msra.mxu0 %v902
    %904 = vmatprep.subr.mxu0 0.0
    %v905 = vand.u32 %v29, 4294901760
    %906 = vmatpush1.msra.mxu0 %v905
    %907 = vmatprep.subr.mxu0 0.0
    %v908 = vand.u32 %v30, 4294901760
    %909 = vmatpush1.msra.mxu0 %v908
    %910 = vmatprep.subr.mxu0 0.0
    %v911 = vand.u32 %v31, 4294901760
    %912 = vmatpush1.msra.mxu0 %v911
    %913 = vmatprep.subr.mxu0 0.0
    %v914 = vand.u32 %v32, 4294901760
    %915 = vmatpush1.msra.mxu0 %v914
    %916 = vmatprep.subr.mxu0 0.0
    %v917 = vand.u32 %v33, 4294901760
    %918 = vmatpush1.msra.mxu0 %v917
    %919 = vmatprep.subr.mxu0 0.0
    %v920 = vand.u32 %v34, 4294901760
    %921 = vmatpush1.msra.mxu0 %v920
    %922 = vmatprep.subr.mxu0 0.0
    %v923 = vand.u32 %v35, 4294901760
    %924 = vmatpush1.msra.mxu0 %v923
    %925 = vmatprep.subr.mxu0 0.0
    %v926 = vand.u32 %v36, 4294901760
    %927 = vmatpush1.msra.mxu0 %v926
    %928 = vmatprep.subr.mxu0 0.0
    %v929 = vand.u32 %v37, 4294901760
    %930 = vmatpush1.msra.mxu0 %v929
    %931 = vmatprep.subr.mxu0 0.0
    %v932 = vand.u32 %v38, 4294901760
    %933 = vmatpush1.msra.mxu0 %v932
    %934 = vmatprep.subr.mxu0 0.0
    %v935 = vand.u32 %v39, 4294901760
    %936 = vmatpush1.msra.mxu0 %v935
    %937 = vmatprep.subr.mxu0 0.0
    %v938 = vand.u32 %v40, 4294901760
    %939 = vmatpush1.msra.mxu0 %v938
    %940 = vmatprep.subr.mxu0 0.0
    %v941 = vand.u32 %v41, 4294901760
    %942 = vmatpush1.msra.mxu0 %v941
    %943 = vmatprep.subr.mxu0 0.0
    %v944 = vand.u32 %v42, 4294901760
    %945 = vmatpush1.msra.mxu0 %v944
    %946 = vmatprep.subr.mxu0 0.0
    %v947 = vand.u32 %v43, 4294901760
    %948 = vmatpush1.msra.mxu0 %v947
    %949 = vmatprep.subr.mxu0 0.0
    %v950 = vand.u32 %v44, 4294901760
    %951 = vmatpush1.msra.mxu0 %v950
    %v952 = vand.u32 %v85, 4294901760
    %953 = vmatprep.mubr.f32.mxu0 %v952
    %v954 = vand.u32 %v81, 4294901760
    %955 = vmatmul.mubr.f32.gmra.mrb[0].mxu0 %v954
    %v956 = vpop.f32.mrb[0].mxu0
    %v957 = vadd.f32 %v853, %v956
    %v958 = vpop.f32.mrb[0].mxu0
    %959 = vdwg.mxu0
    %960 = vmatprep.subr.mxu0 0.0
    %v961 = vand.u32 %v45, 4294901760
    %962 = vmatpush1.msra.mxu0 %v961
    %963 = vmatprep.subr.mxu0 0.0
    %v964 = vand.u32 %v46, 4294901760
    %965 = vmatpush1.msra.mxu0 %v964
    %966 = vmatprep.subr.mxu0 0.0
    %v967 = vand.u32 %v47, 4294901760
    %968 = vmatpush1.msra.mxu0 %v967
    %969 = vmatprep.subr.mxu0 0.0
    %v970 = vand.u32 %v48, 4294901760
    %971 = vmatpush1.msra.mxu0 %v970
    %972 = vmatprep.subr.mxu0 0.0
    %v973 = vand.u32 %v49, 4294901760
    %974 = vmatpush1.msra.mxu0 %v973
    %975 = vmatprep.subr.mxu0 0.0
    %v976 = vand.u32 %v50, 4294901760
    %977 = vmatpush1.msra.mxu0 %v976
    %978 = vmatprep.subr.mxu0 0.0
    %v979 = vand.u32 %v51, 4294901760
    %980 = vmatpush1.msra.mxu0 %v979
    %981 = vmatprep.subr.mxu0 0.0
    %v982 = vand.u32 %v52, 4294901760
    %983 = vmatpush1.msra.mxu0 %v982
    %984 = vmatprep.subr.mxu0 0.0
    %v985 = vand.u32 %v53, 4294901760
    %986 = vmatpush1.msra.mxu0 %v985
    %987 = vmatprep.subr.mxu0 0.0
    %v988 = vand.u32 %v54, 4294901760
    %989 = vmatpush1.msra.mxu0 %v988
    %990 = vmatprep.subr.mxu0 0.0
    %v991 = vand.u32 %v55, 4294901760
    %992 = vmatpush1.msra.mxu0 %v991
    %993 = vmatprep.subr.mxu0 0.0
    %v994 = vand.u32 %v56, 4294901760
    %995 = vmatpush1.msra.mxu0 %v994
    %996 = vmatprep.subr.mxu0 0.0
    %v997 = vand.u32 %v57, 4294901760
    %998 = vmatpush1.msra.mxu0 %v997
    %999 = vmatprep.subr.mxu0 0.0
    %v1000 = vand.u32 %v58, 4294901760
    %1001 = vmatpush1.msra.mxu0 %v1000
    %1002 = vmatprep.subr.mxu0 0.0
    %v1003 = vand.u32 %v59, 4294901760
    %1004 = vmatpush1.msra.mxu0 %v1003
    %1005 = vmatprep.subr.mxu0 0.0
    %v1006 = vand.u32 %v60, 4294901760
    %1007 = vmatpush1.msra.mxu0 %v1006
    %1008 = vmatprep.subr.mxu0 0.0
    %v1009 = vand.u32 %v61, 4294901760
    %1010 = vmatpush1.msra.mxu0 %v1009
    %1011 = vmatprep.subr.mxu0 0.0
    %v1012 = vand.u32 %v62, 4294901760
    %1013 = vmatpush1.msra.mxu0 %v1012
    %1014 = vmatprep.subr.mxu0 0.0
    %v1015 = vand.u32 %v63, 4294901760
    %1016 = vmatpush1.msra.mxu0 %v1015
    %1017 = vmatprep.subr.mxu0 0.0
    %v1018 = vand.u32 %v64, 4294901760
    %1019 = vmatpush1.msra.mxu0 %v1018
    %1020 = vmatprep.subr.mxu0 0.0
    %v1021 = vand.u32 %v65, 4294901760
    %1022 = vmatpush1.msra.mxu0 %v1021
    %1023 = vmatprep.subr.mxu0 0.0
    %v1024 = vand.u32 %v66, 4294901760
    %1025 = vmatpush1.msra.mxu0 %v1024
    %1026 = vmatprep.subr.mxu0 0.0
    %v1027 = vand.u32 %v67, 4294901760
    %1028 = vmatpush1.msra.mxu0 %v1027
    %1029 = vmatprep.subr.mxu0 0.0
    %v1030 = vand.u32 %v68, 4294901760
    %1031 = vmatpush1.msra.mxu0 %v1030
    %1032 = vmatprep.subr.mxu0 0.0
    %v1033 = vand.u32 %v69, 4294901760
    %1034 = vmatpush1.msra.mxu0 %v1033
    %1035 = vmatprep.subr.mxu0 0.0
    %v1036 = vand.u32 %v70, 4294901760
    %1037 = vmatpush1.msra.mxu0 %v1036
    %1038 = vmatprep.subr.mxu0 0.0
    %v1039 = vand.u32 %v71, 4294901760
    %1040 = vmatpush1.msra.mxu0 %v1039
    %1041 = vmatprep.subr.mxu0 0.0
    %v1042 = vand.u32 %v72, 4294901760
    %1043 = vmatpush1.msra.mxu0 %v1042
    %1044 = vmatprep.subr.mxu0 0.0
    %v1045 = vand.u32 %v73, 4294901760
    %1046 = vmatpush1.msra.mxu0 %v1045
    %1047 = vmatprep.subr.mxu0 0.0
    %v1048 = vand.u32 %v74, 4294901760
    %1049 = vmatpush1.msra.mxu0 %v1048
    %1050 = vmatprep.subr.mxu0 0.0
    %v1051 = vand.u32 %v75, 4294901760
    %1052 = vmatpush1.msra.mxu0 %v1051
    %1053 = vmatprep.subr.mxu0 0.0
    %v1054 = vand.u32 %v76, 4294901760
    %1055 = vmatpush1.msra.mxu0 %v1054
    %v1056 = vand.u32 %v93, 4294901760
    %v1057 = vsub.f32 %v93, %v1056
    %v1058 = vand.u32 %v1057, 4294901760
    %v1059 = vsub.f32 %v1057, %v1058
    %v1060 = vand.u32 %v1059, 4294901760
    %1061 = vmatprep.mubr.f32.mxu0 %v1060
    %v1062 = vand.u32 %v89, 4294901760
    %v1063 = vsub.f32 %v89, %v1062
    %v1064 = vand.u32 %v1063, 4294901760
    %v1065 = vsub.f32 %v1063, %v1064
    %v1066 = vand.u32 %v1065, 4294901760
    %1067 = vmatmul.mubr.f32.gmra.mrb[0].mxu0 %v1066
    %v1068 = vpop.f32.mrb[0].mxu0
    %v1069 = vadd.f32 %v957, %v1068
    %v1070 = vpop.f32.mrb[0].mxu0
    %1071 = vdwg.mxu0
    %1072 = vmatprep.subr.mxu0 0.0
    %v1073 = vand.u32 %v45, 4294901760
    %v1074 = vsub.f32 %v45, %v1073
    %v1075 = vand.u32 %v1074, 4294901760
    %v1076 = vsub.f32 %v1074, %v1075
    %v1077 = vand.u32 %v1076, 4294901760
    %1078 = vmatpush1.msra.mxu0 %v1077
    %1079 = vmatprep.subr.mxu0 0.0
    %v1080 = vand.u32 %v46, 4294901760
    %v1081 = vsub.f32 %v46, %v1080
    %v1082 = vand.u32 %v1081, 4294901760
    %v1083 = vsub.f32 %v1081, %v1082
    %v1084 = vand.u32 %v1083, 4294901760
    %1085 = vmatpush1.msra.mxu0 %v1084
    %1086 = vmatprep.subr.mxu0 0.0
    %v1087 = vand.u32 %v47, 4294901760
    %v1088 = vsub.f32 %v47, %v1087
    %v1089 = vand.u32 %v1088, 4294901760
    %v1090 = vsub.f32 %v1088, %v1089
    %v1091 = vand.u32 %v1090, 4294901760
    %1092 = vmatpush1.msra.mxu0 %v1091
    %1093 = vmatprep.subr.mxu0 0.0
    %v1094 = vand.u32 %v48, 4294901760
    %v1095 = vsub.f32 %v48, %v1094
    %v1096 = vand.u32 %v1095, 4294901760
    %v1097 = vsub.f32 %v1095, %v1096
    %v1098 = vand.u32 %v1097, 4294901760
    %1099 = vmatpush1.msra.mxu0 %v1098
    %1100 = vmatprep.subr.mxu0 0.0
    %v1101 = vand.u32 %v49, 4294901760
    %v1102 = vsub.f32 %v49, %v1101
    %v1103 = vand.u32 %v1102, 4294901760
    %v1104 = vsub.f32 %v1102, %v1103
    %v1105 = vand.u32 %v1104, 4294901760
    %1106 = vmatpush1.msra.mxu0 %v1105
    %1107 = vmatprep.subr.mxu0 0.0
    %v1108 = vand.u32 %v50, 4294901760
    %v1109 = vsub.f32 %v50, %v1108
    %v1110 = vand.u32 %v1109, 4294901760
    %v1111 = vsub.f32 %v1109, %v1110
    %v1112 = vand.u32 %v1111, 4294901760
    %1113 = vmatpush1.msra.mxu0 %v1112
    %1114 = vmatprep.subr.mxu0 0.0
    %v1115 = vand.u32 %v51, 4294901760
    %v1116 = vsub.f32 %v51, %v1115
    %v1117 = vand.u32 %v1116, 4294901760
    %v1118 = vsub.f32 %v1116, %v1117
    %v1119 = vand.u32 %v1118, 4294901760
    %1120 = vmatpush1.msra.mxu0 %v1119
    %1121 = vmatprep.subr.mxu0 0.0
    %v1122 = vand.u32 %v52, 4294901760
    %v1123 = vsub.f32 %v52, %v1122
    %v1124 = vand.u32 %v1123, 4294901760
    %v1125 = vsub.f32 %v1123, %v1124
    %v1126 = vand.u32 %v1125, 4294901760
    %1127 = vmatpush1.msra.mxu0 %v1126
    %1128 = vmatprep.subr.mxu0 0.0
    %v1129 = vand.u32 %v53, 4294901760
    %v1130 = vsub.f32 %v53, %v1129
    %v1131 = vand.u32 %v1130, 4294901760
    %v1132 = vsub.f32 %v1130, %v1131
    %v1133 = vand.u32 %v1132, 4294901760
    %1134 = vmatpush1.msra.mxu0 %v1133
    %1135 = vmatprep.subr.mxu0 0.0
    %v1136 = vand.u32 %v54, 4294901760
    %v1137 = vsub.f32 %v54, %v1136
    %v1138 = vand.u32 %v1137, 4294901760
    %v1139 = vsub.f32 %v1137, %v1138
    %v1140 = vand.u32 %v1139, 4294901760
    %1141 = vmatpush1.msra.mxu0 %v1140
    %1142 = vmatprep.subr.mxu0 0.0
    %v1143 = vand.u32 %v55, 4294901760
    %v1144 = vsub.f32 %v55, %v1143
    %v1145 = vand.u32 %v1144, 4294901760
    %v1146 = vsub.f32 %v1144, %v1145
    %v1147 = vand.u32 %v1146, 4294901760
    %1148 = vmatpush1.msra.mxu0 %v1147
    %1149 = vmatprep.subr.mxu0 0.0
    %v1150 = vand.u32 %v56, 4294901760
    %v1151 = vsub.f32 %v56, %v1150
    %v1152 = vand.u32 %v1151, 4294901760
    %v1153 = vsub.f32 %v1151, %v1152
    %v1154 = vand.u32 %v1153, 4294901760
    %1155 = vmatpush1.msra.mxu0 %v1154
    %1156 = vmatprep.subr.mxu0 0.0
    %v1157 = vand.u32 %v57, 4294901760
    %v1158 = vsub.f32 %v57, %v1157
    %v1159 = vand.u32 %v1158, 4294901760
    %v1160 = vsub.f32 %v1158, %v1159
    %v1161 = vand.u32 %v1160, 4294901760
    %1162 = vmatpush1.msra.mxu0 %v1161
    %1163 = vmatprep.subr.mxu0 0.0
    %v1164 = vand.u32 %v58, 4294901760
    %v1165 = vsub.f32 %v58, %v1164
    %v1166 = vand.u32 %v1165, 4294901760
    %v1167 = vsub.f32 %v1165, %v1166
    %v1168 = vand.u32 %v1167, 4294901760
    %1169 = vmatpush1.msra.mxu0 %v1168
    %1170 = vmatprep.subr.mxu0 0.0
    %v1171 = vand.u32 %v59, 4294901760
    %v1172 = vsub.f32 %v59, %v1171
    %v1173 = vand.u32 %v1172, 4294901760
    %v1174 = vsub.f32 %v1172, %v1173
    %v1175 = vand.u32 %v1174, 4294901760
    %1176 = vmatpush1.msra.mxu0 %v1175
    %1177 = vmatprep.subr.mxu0 0.0
    %v1178 = vand.u32 %v60, 4294901760
    %v1179 = vsub.f32 %v60, %v1178
    %v1180 = vand.u32 %v1179, 4294901760
    %v1181 = vsub.f32 %v1179, %v1180
    %v1182 = vand.u32 %v1181, 4294901760
    %1183 = vmatpush1.msra.mxu0 %v1182
    %1184 = vmatprep.subr.mxu0 0.0
    %v1185 = vand.u32 %v61, 4294901760
    %v1186 = vsub.f32 %v61, %v1185
    %v1187 = vand.u32 %v1186, 4294901760
    %v1188 = vsub.f32 %v1186, %v1187
    %v1189 = vand.u32 %v1188, 4294901760
    %1190 = vmatpush1.msra.mxu0 %v1189
    %1191 = vmatprep.subr.mxu0 0.0
    %v1192 = vand.u32 %v62, 4294901760
    %v1193 = vsub.f32 %v62, %v1192
    %v1194 = vand.u32 %v1193, 4294901760
    %v1195 = vsub.f32 %v1193, %v1194
    %v1196 = vand.u32 %v1195, 4294901760
    %1197 = vmatpush1.msra.mxu0 %v1196
    %1198 = vmatprep.subr.mxu0 0.0
    %v1199 = vand.u32 %v63, 4294901760
    %v1200 = vsub.f32 %v63, %v1199
    %v1201 = vand.u32 %v1200, 4294901760
    %v1202 = vsub.f32 %v1200, %v1201
    %v1203 = vand.u32 %v1202, 4294901760
    %1204 = vmatpush1.msra.mxu0 %v1203
    %1205 = vmatprep.subr.mxu0 0.0
    %v1206 = vand.u32 %v64, 4294901760
    %v1207 = vsub.f32 %v64, %v1206
    %v1208 = vand.u32 %v1207, 4294901760
    %v1209 = vsub.f32 %v1207, %v1208
    %v1210 = vand.u32 %v1209, 4294901760
    %1211 = vmatpush1.msra.mxu0 %v1210
    %1212 = vmatprep.subr.mxu0 0.0
    %v1213 = vand.u32 %v65, 4294901760
    %v1214 = vsub.f32 %v65, %v1213
    %v1215 = vand.u32 %v1214, 4294901760
    %v1216 = vsub.f32 %v1214, %v1215
    %v1217 = vand.u32 %v1216, 4294901760
    %1218 = vmatpush1.msra.mxu0 %v1217
    %1219 = vmatprep.subr.mxu0 0.0
    %v1220 = vand.u32 %v66, 4294901760
    %v1221 = vsub.f32 %v66, %v1220
    %v1222 = vand.u32 %v1221, 4294901760
    %v1223 = vsub.f32 %v1221, %v1222
    %v1224 = vand.u32 %v1223, 4294901760
    %1225 = vmatpush1.msra.mxu0 %v1224
    %1226 = vmatprep.subr.mxu0 0.0
    %v1227 = vand.u32 %v67, 4294901760
    %v1228 = vsub.f32 %v67, %v1227
    %v1229 = vand.u32 %v1228, 4294901760
    %v1230 = vsub.f32 %v1228, %v1229
    %v1231 = vand.u32 %v1230, 4294901760
    %1232 = vmatpush1.msra.mxu0 %v1231
    %1233 = vmatprep.subr.mxu0 0.0
    %v1234 = vand.u32 %v68, 4294901760
    %v1235 = vsub.f32 %v68, %v1234
    %v1236 = vand.u32 %v1235, 4294901760
    %v1237 = vsub.f32 %v1235, %v1236
    %v1238 = vand.u32 %v1237, 4294901760
    %1239 = vmatpush1.msra.mxu0 %v1238
    %1240 = vmatprep.subr.mxu0 0.0
    %v1241 = vand.u32 %v69, 4294901760
    %v1242 = vsub.f32 %v69, %v1241
    %v1243 = vand.u32 %v1242, 4294901760
    %v1244 = vsub.f32 %v1242, %v1243
    %v1245 = vand.u32 %v1244, 4294901760
    %1246 = vmatpush1.msra.mxu0 %v1245
    %1247 = vmatprep.subr.mxu0 0.0
    %v1248 = vand.u32 %v70, 4294901760
    %v1249 = vsub.f32 %v70, %v1248
    %v1250 = vand.u32 %v1249, 4294901760
    %v1251 = vsub.f32 %v1249, %v1250
    %v1252 = vand.u32 %v1251, 4294901760
    %1253 = vmatpush1.msra.mxu0 %v1252
    %1254 = vmatprep.subr.mxu0 0.0
    %v1255 = vand.u32 %v71, 4294901760
    %v1256 = vsub.f32 %v71, %v1255
    %v1257 = vand.u32 %v1256, 4294901760
    %v1258 = vsub.f32 %v1256, %v1257
    %v1259 = vand.u32 %v1258, 4294901760
    %1260 = vmatpush1.msra.mxu0 %v1259
    %1261 = vmatprep.subr.mxu0 0.0
    %v1262 = vand.u32 %v72, 4294901760
    %v1263 = vsub.f32 %v72, %v1262
    %v1264 = vand.u32 %v1263, 4294901760
    %v1265 = vsub.f32 %v1263, %v1264
    %v1266 = vand.u32 %v1265, 4294901760
    %1267 = vmatpush1.msra.mxu0 %v1266
    %1268 = vmatprep.subr.mxu0 0.0
    %v1269 = vand.u32 %v73, 4294901760
    %v1270 = vsub.f32 %v73, %v1269
    %v1271 = vand.u32 %v1270, 4294901760
    %v1272 = vsub.f32 %v1270, %v1271
    %v1273 = vand.u32 %v1272, 4294901760
    %1274 = vmatpush1.msra.mxu0 %v1273
    %1275 = vmatprep.subr.mxu0 0.0
    %v1276 = vand.u32 %v74, 4294901760
    %v1277 = vsub.f32 %v74, %v1276
    %v1278 = vand.u32 %v1277, 4294901760
    %v1279 = vsub.f32 %v1277, %v1278
    %v1280 = vand.u32 %v1279, 4294901760
    %1281 = vmatpush1.msra.mxu0 %v1280
    %1282 = vmatprep.subr.mxu0 0.0
    %v1283 = vand.u32 %v75, 4294901760
    %v1284 = vsub.f32 %v75, %v1283
    %v1285 = vand.u32 %v1284, 4294901760
    %v1286 = vsub.f32 %v1284, %v1285
    %v1287 = vand.u32 %v1286, 4294901760
    %1288 = vmatpush1.msra.mxu0 %v1287
    %1289 = vmatprep.subr.mxu0 0.0
    %v1290 = vand.u32 %v76, 4294901760
    %v1291 = vsub.f32 %v76, %v1290
    %v1292 = vand.u32 %v1291, 4294901760
    %v1293 = vsub.f32 %v1291, %v1292
    %v1294 = vand.u32 %v1293, 4294901760
    %1295 = vmatpush1.msra.mxu0 %v1294
    %v1296 = vand.u32 %v93, 4294901760
    %1297 = vmatprep.mubr.f32.mxu0 %v1296
    %v1298 = vand.u32 %v89, 4294901760
    %1299 = vmatmul.mubr.f32.gmra.mrb[0].mxu0 %v1298
    %v1300 = vpop.f32.mrb[0].mxu0
    %v1301 = vadd.f32 %v1069, %v1300
    %v1302 = vpop.f32.mrb[0].mxu0
    %1303 = vdwg.mxu0
    %1304 = vmatprep.subr.mxu0 0.0
    %v1305 = vand.u32 %v45, 4294901760
    %v1306 = vsub.f32 %v45, %v1305
    %1307 = vmatpush1.msra.mxu0 %v1306
    %1308 = vmatprep.subr.mxu0 0.0
    %v1309 = vand.u32 %v46, 4294901760
    %v1310 = vsub.f32 %v46, %v1309
    %1311 = vmatpush1.msra.mxu0 %v1310
    %1312 = vmatprep.subr.mxu0 0.0
    %v1313 = vand.u32 %v47, 4294901760
    %v1314 = vsub.f32 %v47, %v1313
    %1315 = vmatpush1.msra.mxu0 %v1314
    %1316 = vmatprep.subr.mxu0 0.0
    %v1317 = vand.u32 %v48, 4294901760
    %v1318 = vsub.f32 %v48, %v1317
    %1319 = vmatpush1.msra.mxu0 %v1318
    %1320 = vmatprep.subr.mxu0 0.0
    %v1321 = vand.u32 %v49, 4294901760
    %v1322 = vsub.f32 %v49, %v1321
    %1323 = vmatpush1.msra.mxu0 %v1322
    %1324 = vmatprep.subr.mxu0 0.0
    %v1325 = vand.u32 %v50, 4294901760
    %v1326 = vsub.f32 %v50, %v1325
    %1327 = vmatpush1.msra.mxu0 %v1326
    %1328 = vmatprep.subr.mxu0 0.0
    %v1329 = vand.u32 %v51, 4294901760
    %v1330 = vsub.f32 %v51, %v1329
    %1331 = vmatpush1.msra.mxu0 %v1330
    %1332 = vmatprep.subr.mxu0 0.0
    %v1333 = vand.u32 %v52, 4294901760
    %v1334 = vsub.f32 %v52, %v1333
    %1335 = vmatpush1.msra.mxu0 %v1334
    %1336 = vmatprep.subr.mxu0 0.0
    %v1337 = vand.u32 %v53, 4294901760
    %v1338 = vsub.f32 %v53, %v1337
    %1339 = vmatpush1.msra.mxu0 %v1338
    %1340 = vmatprep.subr.mxu0 0.0
    %v1341 = vand.u32 %v54, 4294901760
    %v1342 = vsub.f32 %v54, %v1341
    %1343 = vmatpush1.msra.mxu0 %v1342
    %1344 = vmatprep.subr.mxu0 0.0
    %v1345 = vand.u32 %v55, 4294901760
    %v1346 = vsub.f32 %v55, %v1345
    %1347 = vmatpush1.msra.mxu0 %v1346
    %1348 = vmatprep.subr.mxu0 0.0
    %v1349 = vand.u32 %v56, 4294901760
    %v1350 = vsub.f32 %v56, %v1349
    %1351 = vmatpush1.msra.mxu0 %v1350
    %1352 = vmatprep.subr.mxu0 0.0
    %v1353 = vand.u32 %v57, 4294901760
    %v1354 = vsub.f32 %v57, %v1353
    %1355 = vmatpush1.msra.mxu0 %v1354
    %1356 = vmatprep.subr.mxu0 0.0
    %v1357 = vand.u32 %v58, 4294901760
    %v1358 = vsub.f32 %v58, %v1357
    %1359 = vmatpush1.msra.mxu0 %v1358
    %1360 = vmatprep.subr.mxu0 0.0
    %v1361 = vand.u32 %v59, 4294901760
    %v1362 = vsub.f32 %v59, %v1361
    %1363 = vmatpush1.msra.mxu0 %v1362
    %1364 = vmatprep.subr.mxu0 0.0
    %v1365 = vand.u32 %v60, 4294901760
    %v1366 = vsub.f32 %v60, %v1365
    %1367 = vmatpush1.msra.mxu0 %v1366
    %1368 = vmatprep.subr.mxu0 0.0
    %v1369 = vand.u32 %v61, 4294901760
    %v1370 = vsub.f32 %v61, %v1369
    %1371 = vmatpush1.msra.mxu0 %v1370
    %1372 = vmatprep.subr.mxu0 0.0
    %v1373 = vand.u32 %v62, 4294901760
    %v1374 = vsub.f32 %v62, %v1373
    %1375 = vmatpush1.msra.mxu0 %v1374
    %1376 = vmatprep.subr.mxu0 0.0
    %v1377 = vand.u32 %v63, 4294901760
    %v1378 = vsub.f32 %v63, %v1377
    %1379 = vmatpush1.msra.mxu0 %v1378
    %1380 = vmatprep.subr.mxu0 0.0
    %v1381 = vand.u32 %v64, 4294901760
    %v1382 = vsub.f32 %v64, %v1381
    %1383 = vmatpush1.msra.mxu0 %v1382
    %1384 = vmatprep.subr.mxu0 0.0
    %v1385 = vand.u32 %v65, 4294901760
    %v1386 = vsub.f32 %v65, %v1385
    %1387 = vmatpush1.msra.mxu0 %v1386
    %1388 = vmatprep.subr.mxu0 0.0
    %v1389 = vand.u32 %v66, 4294901760
    %v1390 = vsub.f32 %v66, %v1389
    %1391 = vmatpush1.msra.mxu0 %v1390
    %1392 = vmatprep.subr.mxu0 0.0
    %v1393 = vand.u32 %v67, 4294901760
    %v1394 = vsub.f32 %v67, %v1393
    %1395 = vmatpush1.msra.mxu0 %v1394
    %1396 = vmatprep.subr.mxu0 0.0
    %v1397 = vand.u32 %v68, 4294901760
    %v1398 = vsub.f32 %v68, %v1397
    %1399 = vmatpush1.msra.mxu0 %v1398
    %1400 = vmatprep.subr.mxu0 0.0
    %v1401 = vand.u32 %v69, 4294901760
    %v1402 = vsub.f32 %v69, %v1401
    %1403 = vmatpush1.msra.mxu0 %v1402
    %1404 = vmatprep.subr.mxu0 0.0
    %v1405 = vand.u32 %v70, 4294901760
    %v1406 = vsub.f32 %v70, %v1405
    %1407 = vmatpush1.msra.mxu0 %v1406
    %1408 = vmatprep.subr.mxu0 0.0
    %v1409 = vand.u32 %v71, 4294901760
    %v1410 = vsub.f32 %v71, %v1409
    %1411 = vmatpush1.msra.mxu0 %v1410
    %1412 = vmatprep.subr.mxu0 0.0
    %v1413 = vand.u32 %v72, 4294901760
    %v1414 = vsub.f32 %v72, %v1413
    %1415 = vmatpush1.msra.mxu0 %v1414
    %1416 = vmatprep.subr.mxu0 0.0
    %v1417 = vand.u32 %v73, 4294901760
    %v1418 = vsub.f32 %v73, %v1417
    %1419 = vmatpush1.msra.mxu0 %v1418
    %1420 = vmatprep.subr.mxu0 0.0
    %v1421 = vand.u32 %v74, 4294901760
    %v1422 = vsub.f32 %v74, %v1421
    %1423 = vmatpush1.msra.mxu0 %v1422
    %1424 = vmatprep.subr.mxu0 0.0
    %v1425 = vand.u32 %v75, 4294901760
    %v1426 = vsub.f32 %v75, %v1425
    %1427 = vmatpush1.msra.mxu0 %v1426
    %1428 = vmatprep.subr.mxu0 0.0
    %v1429 = vand.u32 %v76, 4294901760
    %v1430 = vsub.f32 %v76, %v1429
    %1431 = vmatpush1.msra.mxu0 %v1430
    %v1432 = vand.u32 %v93, 4294901760
    %v1433 = vsub.f32 %v93, %v1432
    %1434 = vmatprep.mubr.f32.mxu0 %v1433
    %v1435 = vand.u32 %v89, 4294901760
    %v1436 = vsub.f32 %v89, %v1435
    %1437 = vmatmul.mubr.f32.gmra.mrb[0].mxu0 %v1436
    %v1438 = vpop.f32.mrb[0].mxu0
    %v1439 = vadd.f32 %v1301, %v1438
    %v1440 = vpop.f32.mrb[0].mxu0
    %1441 = vdwg.mxu0
    %1442 = vmatprep.subr.mxu0 0.0
    %v1443 = vand.u32 %v45, 4294901760
    %1444 = vmatpush1.msra.mxu0 %v1443
    %1445 = vmatprep.subr.mxu0 0.0
    %v1446 = vand.u32 %v46, 4294901760
    %1447 = vmatpush1.msra.mxu0 %v1446
    %1448 = vmatprep.subr.mxu0 0.0
    %v1449 = vand.u32 %v47, 4294901760
    %1450 = vmatpush1.msra.mxu0 %v1449
    %1451 = vmatprep.subr.mxu0 0.0
    %v1452 = vand.u32 %v48, 4294901760
    %1453 = vmatpush1.msra.mxu0 %v1452
    %1454 = vmatprep.subr.mxu0 0.0
    %v1455 = vand.u32 %v49, 4294901760
    %1456 = vmatpush1.msra.mxu0 %v1455
    %1457 = vmatprep.subr.mxu0 0.0
    %v1458 = vand.u32 %v50, 4294901760
    %1459 = vmatpush1.msra.mxu0 %v1458
    %1460 = vmatprep.subr.mxu0 0.0
    %v1461 = vand.u32 %v51, 4294901760
    %1462 = vmatpush1.msra.mxu0 %v1461
    %1463 = vmatprep.subr.mxu0 0.0
    %v1464 = vand.u32 %v52, 4294901760
    %1465 = vmatpush1.msra.mxu0 %v1464
    %1466 = vmatprep.subr.mxu0 0.0
    %v1467 = vand.u32 %v53, 4294901760
    %1468 = vmatpush1.msra.mxu0 %v1467
    %1469 = vmatprep.subr.mxu0 0.0
    %v1470 = vand.u32 %v54, 4294901760
    %1471 = vmatpush1.msra.mxu0 %v1470
    %1472 = vmatprep.subr.mxu0 0.0
    %v1473 = vand.u32 %v55, 4294901760
    %1474 = vmatpush1.msra.mxu0 %v1473
    %1475 = vmatprep.subr.mxu0 0.0
    %v1476 = vand.u32 %v56, 4294901760
    %1477 = vmatpush1.msra.mxu0 %v1476
    %1478 = vmatprep.subr.mxu0 0.0
    %v1479 = vand.u32 %v57, 4294901760
    %1480 = vmatpush1.msra.mxu0 %v1479
    %1481 = vmatprep.subr.mxu0 0.0
    %v1482 = vand.u32 %v58, 4294901760
    %1483 = vmatpush1.msra.mxu0 %v1482
    %1484 = vmatprep.subr.mxu0 0.0
    %v1485 = vand.u32 %v59, 4294901760
    %1486 = vmatpush1.msra.mxu0 %v1485
    %1487 = vmatprep.subr.mxu0 0.0
    %v1488 = vand.u32 %v60, 4294901760
    %1489 = vmatpush1.msra.mxu0 %v1488
    %1490 = vmatprep.subr.mxu0 0.0
    %v1491 = vand.u32 %v61, 4294901760
    %1492 = vmatpush1.msra.mxu0 %v1491
    %1493 = vmatprep.subr.mxu0 0.0
    %v1494 = vand.u32 %v62, 4294901760
    %1495 = vmatpush1.msra.mxu0 %v1494
    %1496 = vmatprep.subr.mxu0 0.0
    %v1497 = vand.u32 %v63, 4294901760
    %1498 = vmatpush1.msra.mxu0 %v1497
    %1499 = vmatprep.subr.mxu0 0.0
    %v1500 = vand.u32 %v64, 4294901760
    %1501 = vmatpush1.msra.mxu0 %v1500
    %1502 = vmatprep.subr.mxu0 0.0
    %v1503 = vand.u32 %v65, 4294901760
    %1504 = vmatpush1.msra.mxu0 %v1503
    %1505 = vmatprep.subr.mxu0 0.0
    %v1506 = vand.u32 %v66, 4294901760
    %1507 = vmatpush1.msra.mxu0 %v1506
    %1508 = vmatprep.subr.mxu0 0.0
    %v1509 = vand.u32 %v67, 4294901760
    %1510 = vmatpush1.msra.mxu0 %v1509
    %1511 = vmatprep.subr.mxu0 0.0
    %v1512 = vand.u32 %v68, 4294901760
    %1513 = vmatpush1.msra.mxu0 %v1512
    %1514 = vmatprep.subr.mxu0 0.0
    %v1515 = vand.u32 %v69, 4294901760
    %1516 = vmatpush1.msra.mxu0 %v1515
    %1517 = vmatprep.subr.mxu0 0.0
    %v1518 = vand.u32 %v70, 4294901760
    %1519 = vmatpush1.msra.mxu0 %v1518
    %1520 = vmatprep.subr.mxu0 0.0
    %v1521 = vand.u32 %v71, 4294901760
    %1522 = vmatpush1.msra.mxu0 %v1521
    %1523 = vmatprep.subr.mxu0 0.0
    %v1524 = vand.u32 %v72, 4294901760
    %1525 = vmatpush1.msra.mxu0 %v1524
    %1526 = vmatprep.subr.mxu0 0.0
    %v1527 = vand.u32 %v73, 4294901760
    %1528 = vmatpush1.msra.mxu0 %v1527
    %1529 = vmatprep.subr.mxu0 0.0
    %v1530 = vand.u32 %v74, 4294901760
    %1531 = vmatpush1.msra.mxu0 %v1530
    %1532 = vmatprep.subr.mxu0 0.0
    %v1533 = vand.u32 %v75, 4294901760
    %1534 = vmatpush1.msra.mxu0 %v1533
    %1535 = vmatprep.subr.mxu0 0.0
    %v1536 = vand.u32 %v76, 4294901760
    %1537 = vmatpush1.msra.mxu0 %v1536
    %v1538 = vand.u32 %v93, 4294901760
    %v1539 = vsub.f32 %v93, %v1538
    %v1540 = vand.u32 %v1539, 4294901760
    %1541 = vmatprep.mubr.f32.mxu0 %v1540
    %v1542 = vand.u32 %v89, 4294901760
    %v1543 = vsub.f32 %v89, %v1542
    %v1544 = vand.u32 %v1543, 4294901760
    %1545 = vmatmul.mubr.f32.gmra.mrb[0].mxu0 %v1544
    %v1546 = vpop.f32.mrb[0].mxu0
    %v1547 = vadd.f32 %v1439, %v1546
    %v1548 = vpop.f32.mrb[0].mxu0
    %1549 = vdwg.mxu0
    %1550 = vmatprep.subr.mxu0 0.0
    %v1551 = vand.u32 %v45, 4294901760
    %v1552 = vsub.f32 %v45, %v1551
    %v1553 = vand.u32 %v1552, 4294901760
    %1554 = vmatpush1.msra.mxu0 %v1553
    %1555 = vmatprep.subr.mxu0 0.0
    %v1556 = vand.u32 %v46, 4294901760
    %v1557 = vsub.f32 %v46, %v1556
    %v1558 = vand.u32 %v1557, 4294901760
    %1559 = vmatpush1.msra.mxu0 %v1558
    %1560 = vmatprep.subr.mxu0 0.0
    %v1561 = vand.u32 %v47, 4294901760
    %v1562 = vsub.f32 %v47, %v1561
    %v1563 = vand.u32 %v1562, 4294901760
    %1564 = vmatpush1.msra.mxu0 %v1563
    %1565 = vmatprep.subr.mxu0 0.0
    %v1566 = vand.u32 %v48, 4294901760
    %v1567 = vsub.f32 %v48, %v1566
    %v1568 = vand.u32 %v1567, 4294901760
    %1569 = vmatpush1.msra.mxu0 %v1568
    %1570 = vmatprep.subr.mxu0 0.0
    %v1571 = vand.u32 %v49, 4294901760
    %v1572 = vsub.f32 %v49, %v1571
    %v1573 = vand.u32 %v1572, 4294901760
    %1574 = vmatpush1.msra.mxu0 %v1573
    %1575 = vmatprep.subr.mxu0 0.0
    %v1576 = vand.u32 %v50, 4294901760
    %v1577 = vsub.f32 %v50, %v1576
    %v1578 = vand.u32 %v1577, 4294901760
    %1579 = vmatpush1.msra.mxu0 %v1578
    %1580 = vmatprep.subr.mxu0 0.0
    %v1581 = vand.u32 %v51, 4294901760
    %v1582 = vsub.f32 %v51, %v1581
    %v1583 = vand.u32 %v1582, 4294901760
    %1584 = vmatpush1.msra.mxu0 %v1583
    %1585 = vmatprep.subr.mxu0 0.0
    %v1586 = vand.u32 %v52, 4294901760
    %v1587 = vsub.f32 %v52, %v1586
    %v1588 = vand.u32 %v1587, 4294901760
    %1589 = vmatpush1.msra.mxu0 %v1588
    %1590 = vmatprep.subr.mxu0 0.0
    %v1591 = vand.u32 %v53, 4294901760
    %v1592 = vsub.f32 %v53, %v1591
    %v1593 = vand.u32 %v1592, 4294901760
    %1594 = vmatpush1.msra.mxu0 %v1593
    %1595 = vmatprep.subr.mxu0 0.0
    %v1596 = vand.u32 %v54, 4294901760
    %v1597 = vsub.f32 %v54, %v1596
    %v1598 = vand.u32 %v1597, 4294901760
    %1599 = vmatpush1.msra.mxu0 %v1598
    %1600 = vmatprep.subr.mxu0 0.0
    %v1601 = vand.u32 %v55, 4294901760
    %v1602 = vsub.f32 %v55, %v1601
    %v1603 = vand.u32 %v1602, 4294901760
    %1604 = vmatpush1.msra.mxu0 %v1603
    %1605 = vmatprep.subr.mxu0 0.0
    %v1606 = vand.u32 %v56, 4294901760
    %v1607 = vsub.f32 %v56, %v1606
    %v1608 = vand.u32 %v1607, 4294901760
    %1609 = vmatpush1.msra.mxu0 %v1608
    %1610 = vmatprep.subr.mxu0 0.0
    %v1611 = vand.u32 %v57, 4294901760
    %v1612 = vsub.f32 %v57, %v1611
    %v1613 = vand.u32 %v1612, 4294901760
    %1614 = vmatpush1.msra.mxu0 %v1613
    %1615 = vmatprep.subr.mxu0 0.0
    %v1616 = vand.u32 %v58, 4294901760
    %v1617 = vsub.f32 %v58, %v1616
    %v1618 = vand.u32 %v1617, 4294901760
    %1619 = vmatpush1.msra.mxu0 %v1618
    %1620 = vmatprep.subr.mxu0 0.0
    %v1621 = vand.u32 %v59, 4294901760
    %v1622 = vsub.f32 %v59, %v1621
    %v1623 = vand.u32 %v1622, 4294901760
    %1624 = vmatpush1.msra.mxu0 %v1623
    %1625 = vmatprep.subr.mxu0 0.0
    %v1626 = vand.u32 %v60, 4294901760
    %v1627 = vsub.f32 %v60, %v1626
    %v1628 = vand.u32 %v1627, 4294901760
    %1629 = vmatpush1.msra.mxu0 %v1628
    %1630 = vmatprep.subr.mxu0 0.0
    %v1631 = vand.u32 %v61, 4294901760
    %v1632 = vsub.f32 %v61, %v1631
    %v1633 = vand.u32 %v1632, 4294901760
    %1634 = vmatpush1.msra.mxu0 %v1633
    %1635 = vmatprep.subr.mxu0 0.0
    %v1636 = vand.u32 %v62, 4294901760
    %v1637 = vsub.f32 %v62, %v1636
    %v1638 = vand.u32 %v1637, 4294901760
    %1639 = vmatpush1.msra.mxu0 %v1638
    %1640 = vmatprep.subr.mxu0 0.0
    %v1641 = vand.u32 %v63, 4294901760
    %v1642 = vsub.f32 %v63, %v1641
    %v1643 = vand.u32 %v1642, 4294901760
    %1644 = vmatpush1.msra.mxu0 %v1643
    %1645 = vmatprep.subr.mxu0 0.0
    %v1646 = vand.u32 %v64, 4294901760
    %v1647 = vsub.f32 %v64, %v1646
    %v1648 = vand.u32 %v1647, 4294901760
    %1649 = vmatpush1.msra.mxu0 %v1648
    %1650 = vmatprep.subr.mxu0 0.0
    %v1651 = vand.u32 %v65, 4294901760
    %v1652 = vsub.f32 %v65, %v1651
    %v1653 = vand.u32 %v1652, 4294901760
    %1654 = vmatpush1.msra.mxu0 %v1653
    %1655 = vmatprep.subr.mxu0 0.0
    %v1656 = vand.u32 %v66, 4294901760
    %v1657 = vsub.f32 %v66, %v1656
    %v1658 = vand.u32 %v1657, 4294901760
    %1659 = vmatpush1.msra.mxu0 %v1658
    %1660 = vmatprep.subr.mxu0 0.0
    %v1661 = vand.u32 %v67, 4294901760
    %v1662 = vsub.f32 %v67, %v1661
    %v1663 = vand.u32 %v1662, 4294901760
    %1664 = vmatpush1.msra.mxu0 %v1663
    %1665 = vmatprep.subr.mxu0 0.0
    %v1666 = vand.u32 %v68, 4294901760
    %v1667 = vsub.f32 %v68, %v1666
    %v1668 = vand.u32 %v1667, 4294901760
    %1669 = vmatpush1.msra.mxu0 %v1668
    %1670 = vmatprep.subr.mxu0 0.0
    %v1671 = vand.u32 %v69, 4294901760
    %v1672 = vsub.f32 %v69, %v1671
    %v1673 = vand.u32 %v1672, 4294901760
    %1674 = vmatpush1.msra.mxu0 %v1673
    %1675 = vmatprep.subr.mxu0 0.0
    %v1676 = vand.u32 %v70, 4294901760
    %v1677 = vsub.f32 %v70, %v1676
    %v1678 = vand.u32 %v1677, 4294901760
    %1679 = vmatpush1.msra.mxu0 %v1678
    %1680 = vmatprep.subr.mxu0 0.0
    %v1681 = vand.u32 %v71, 4294901760
    %v1682 = vsub.f32 %v71, %v1681
    %v1683 = vand.u32 %v1682, 4294901760
    %1684 = vmatpush1.msra.mxu0 %v1683
    %1685 = vmatprep.subr.mxu0 0.0
    %v1686 = vand.u32 %v72, 4294901760
    %v1687 = vsub.f32 %v72, %v1686
    %v1688 = vand.u32 %v1687, 4294901760
    %1689 = vmatpush1.msra.mxu0 %v1688
    %1690 = vmatprep.subr.mxu0 0.0
    %v1691 = vand.u32 %v73, 4294901760
    %v1692 = vsub.f32 %v73, %v1691
    %v1693 = vand.u32 %v1692, 4294901760
    %1694 = vmatpush1.msra.mxu0 %v1693
    %1695 = vmatprep.subr.mxu0 0.0
    %v1696 = vand.u32 %v74, 4294901760
    %v1697 = vsub.f32 %v74, %v1696
    %v1698 = vand.u32 %v1697, 4294901760
    %1699 = vmatpush1.msra.mxu0 %v1698
    %1700 = vmatprep.subr.mxu0 0.0
    %v1701 = vand.u32 %v75, 4294901760
    %v1702 = vsub.f32 %v75, %v1701
    %v1703 = vand.u32 %v1702, 4294901760
    %1704 = vmatpush1.msra.mxu0 %v1703
    %1705 = vmatprep.subr.mxu0 0.0
    %v1706 = vand.u32 %v76, 4294901760
    %v1707 = vsub.f32 %v76, %v1706
    %v1708 = vand.u32 %v1707, 4294901760
    %1709 = vmatpush1.msra.mxu0 %v1708
    %v1710 = vand.u32 %v93, 4294901760
    %1711 = vmatprep.mubr.f32.mxu0 %v1710
    %v1712 = vand.u32 %v89, 4294901760
    %1713 = vmatmul.mubr.f32.gmra.mrb[0].mxu0 %v1712
    %v1714 = vpop.f32.mrb[0].mxu0
    %v1715 = vadd.f32 %v1547, %v1714
    %v1716 = vpop.f32.mrb[0].mxu0
    %1717 = vdwg.mxu0
    %1718 = vmatprep.subr.mxu0 0.0
    %v1719 = vand.u32 %v45, 4294901760
    %1720 = vmatpush1.msra.mxu0 %v1719
    %1721 = vmatprep.subr.mxu0 0.0
    %v1722 = vand.u32 %v46, 4294901760
    %1723 = vmatpush1.msra.mxu0 %v1722
    %1724 = vmatprep.subr.mxu0 0.0
    %v1725 = vand.u32 %v47, 4294901760
    %1726 = vmatpush1.msra.mxu0 %v1725
    %1727 = vmatprep.subr.mxu0 0.0
    %v1728 = vand.u32 %v48, 4294901760
    %1729 = vmatpush1.msra.mxu0 %v1728
    %1730 = vmatprep.subr.mxu0 0.0
    %v1731 = vand.u32 %v49, 4294901760
    %1732 = vmatpush1.msra.mxu0 %v1731
    %1733 = vmatprep.subr.mxu0 0.0
    %v1734 = vand.u32 %v50, 4294901760
    %1735 = vmatpush1.msra.mxu0 %v1734
    %1736 = vmatprep.subr.mxu0 0.0
    %v1737 = vand.u32 %v51, 4294901760
    %1738 = vmatpush1.msra.mxu0 %v1737
    %1739 = vmatprep.subr.mxu0 0.0
    %v1740 = vand.u32 %v52, 4294901760
    %1741 = vmatpush1.msra.mxu0 %v1740
    %1742 = vmatprep.subr.mxu0 0.0
    %v1743 = vand.u32 %v53, 4294901760
    %1744 = vmatpush1.msra.mxu0 %v1743
    %1745 = vmatprep.subr.mxu0 0.0
    %v1746 = vand.u32 %v54, 4294901760
    %1747 = vmatpush1.msra.mxu0 %v1746
    %1748 = vmatprep.subr.mxu0 0.0
    %v1749 = vand.u32 %v55, 4294901760
    %1750 = vmatpush1.msra.mxu0 %v1749
    %1751 = vmatprep.subr.mxu0 0.0
    %v1752 = vand.u32 %v56, 4294901760
    %1753 = vmatpush1.msra.mxu0 %v1752
    %1754 = vmatprep.subr.mxu0 0.0
    %v1755 = vand.u32 %v57, 4294901760
    %1756 = vmatpush1.msra.mxu0 %v1755
    %1757 = vmatprep.subr.mxu0 0.0
    %v1758 = vand.u32 %v58, 4294901760
    %1759 = vmatpush1.msra.mxu0 %v1758
    %1760 = vmatprep.subr.mxu0 0.0
    %v1761 = vand.u32 %v59, 4294901760
    %1762 = vmatpush1.msra.mxu0 %v1761
    %1763 = vmatprep.subr.mxu0 0.0
    %v1764 = vand.u32 %v60, 4294901760
    %1765 = vmatpush1.msra.mxu0 %v1764
    %1766 = vmatprep.subr.mxu0 0.0
    %v1767 = vand.u32 %v61, 4294901760
    %1768 = vmatpush1.msra.mxu0 %v1767
    %1769 = vmatprep.subr.mxu0 0.0
    %v1770 = vand.u32 %v62, 4294901760
    %1771 = vmatpush1.msra.mxu0 %v1770
    %1772 = vmatprep.subr.mxu0 0.0
    %v1773 = vand.u32 %v63, 4294901760
    %1774 = vmatpush1.msra.mxu0 %v1773
    %1775 = vmatprep.subr.mxu0 0.0
    %v1776 = vand.u32 %v64, 4294901760
    %1777 = vmatpush1.msra.mxu0 %v1776
    %1778 = vmatprep.subr.mxu0 0.0
    %v1779 = vand.u32 %v65, 4294901760
    %1780 = vmatpush1.msra.mxu0 %v1779
    %1781 = vmatprep.subr.mxu0 0.0
    %v1782 = vand.u32 %v66, 4294901760
    %1783 = vmatpush1.msra.mxu0 %v1782
    %1784 = vmatprep.subr.mxu0 0.0
    %v1785 = vand.u32 %v67, 4294901760
    %1786 = vmatpush1.msra.mxu0 %v1785
    %1787 = vmatprep.subr.mxu0 0.0
    %v1788 = vand.u32 %v68, 4294901760
    %1789 = vmatpush1.msra.mxu0 %v1788
    %1790 = vmatprep.subr.mxu0 0.0
    %v1791 = vand.u32 %v69, 4294901760
    %1792 = vmatpush1.msra.mxu0 %v1791
    %1793 = vmatprep.subr.mxu0 0.0
    %v1794 = vand.u32 %v70, 4294901760
    %1795 = vmatpush1.msra.mxu0 %v1794
    %1796 = vmatprep.subr.mxu0 0.0
    %v1797 = vand.u32 %v71, 4294901760
    %1798 = vmatpush1.msra.mxu0 %v1797
    %1799 = vmatprep.subr.mxu0 0.0
    %v1800 = vand.u32 %v72, 4294901760
    %1801 = vmatpush1.msra.mxu0 %v1800
    %1802 = vmatprep.subr.mxu0 0.0
    %v1803 = vand.u32 %v73, 4294901760
    %1804 = vmatpush1.msra.mxu0 %v1803
    %1805 = vmatprep.subr.mxu0 0.0
    %v1806 = vand.u32 %v74, 4294901760
    %1807 = vmatpush1.msra.mxu0 %v1806
    %1808 = vmatprep.subr.mxu0 0.0
    %v1809 = vand.u32 %v75, 4294901760
    %1810 = vmatpush1.msra.mxu0 %v1809
    %1811 = vmatprep.subr.mxu0 0.0
    %v1812 = vand.u32 %v76, 4294901760
    %1813 = vmatpush1.msra.mxu0 %v1812
    %v1814 = vand.u32 %v93, 4294901760
    %1815 = vmatprep.mubr.f32.mxu0 %v1814
    %v1816 = vand.u32 %v89, 4294901760
    %1817 = vmatmul.mubr.f32.gmra.mrb[0].mxu0 %v1816
    %v1818 = vpop.f32.mrb[0].mxu0
    %v1819 = vadd.f32 %v1715, %v1818
    %v1820 = vpop.f32.mrb[0].mxu0
    %1821 = vdwg.mxu0
    %vm1822 = vcmask 122880
    %1823 = vst.msk [vmem:[#allocation2] sm:$0x1] %vm1822, %v1819
    // Predicated region
    $region10: #{tpu_custom_call.1} parent=1 // pred_check
      _
    $region11: #{tpu_custom_call.1} parent=1 // pred_check_branch
      %1825 = sbr.rel (0) target = $region13
    $region12: #{tpu_custom_call.1} parent=1 // pred_region
      %s1827 = ssub.s32 16, 16
      %1828 = vsyncadd [#allocation3], %s1827
      %s1830 = sshll.u32 [#allocation2], 4
      %s1831 = int_to_ptr.vmem [resolvable:$true] %s1830
      %1833 = dma.vmem_to_hbm [thread:$0]  %s1831, 16, %s2, [#allocation3]
    $region13: #{tpu_custom_call.1} parent=1 // pred_fallthru
      _
    // Predicated region
    $region14: #{tpu_custom_call.1} parent=1 // pred_check
      _
    $region15: #{tpu_custom_call.1} parent=1 // pred_check_branch
      %1835 = sbr.rel (0) target = $region17
    $region16: #{tpu_custom_call.1} parent=1 // pred_region
      %1836 = dma.done [#allocation3], 16
    $region17: #{tpu_custom_call.1} parent=1 // pred_fallthru
      _
    %1837 = vsyncpa [#allocation3], 1

</llo_original>
